<compile_context>
chip_gen: v7x
topology: tpu7x:2x2x1
jax: 0.10.0
libtpu: 0.0.40
codegen_flags: <defaults>
</compile_context>

<pallas_src>
import math
import functools

import jax
import jax.numpy as jnp
from jax.experimental import pallas as pl
from jax.experimental.pallas import tpu as pltpu


# ----------------------------- helpers ---------------------------------------

def _round_up(x, m):
    return (x + m - 1) // m * m


# ----------------------------- Pallas kernel ---------------------------------

def _conv_bn_relu_kernel(x_ref, w_ref, scale_ref, bias_ref, o_ref, *, k, stride, l_out):
    # x_ref:     (stride, 1, L_phase, C_in)  stride-phase slabs of padded input (bf16)
    # w_ref:     (k, C_in, tn)               per-tap weight matrices (bf16)
    # scale_ref: (1, tn)   gamma / sqrt(var + eps)              (f32)
    # bias_ref:  (1, tn)   (conv_bias - mean) * scale + beta    (f32)
    # o_ref:     (1, l_out, tn)
    # Conv1d = sum over taps j of a contiguous-slab MXU matmul; f32 accumulate.
    acc = jnp.dot(x_ref[0, 0, 0:l_out, :], w_ref[0],
                  preferred_element_type=jnp.float32)
    for j in range(1, k):
        p, q = j % stride, j // stride
        acc = acc + jnp.dot(x_ref[p, 0, q:q + l_out, :], w_ref[j],
                            preferred_element_type=jnp.float32)
    y = jnp.maximum(acc * scale_ref[...] + bias_ref[...], 0.0)
    o_ref[0] = y.astype(o_ref.dtype)


# ------------------------------ JAX glue --------------------------------------

def _phase_split(x_nwc, k, stride, pad, l_out):
    # (B, L, C) -> (stride, B, L_phase, C); phase p holds padded rows p, p+stride, ...
    # Output row t, tap j reads phase (j % stride) at contiguous index t + j // stride.
    B, L, C = x_nwc.shape
    x_pad = jnp.pad(x_nwc, ((0, 0), (pad, pad), (0, 0)))
    l_phase = l_out + (k - 1) // stride
    phases = []
    for p in range(stride):
        ph = x_pad[:, p::stride, :]
        n = ph.shape[1]
        if n < l_phase:
            ph = jnp.pad(ph, ((0, 0), (0, l_phase - n), (0, 0)))
        elif n > l_phase:
            ph = ph[:, :l_phase, :]
        phases.append(ph)
    return jnp.stack(phases, axis=0)


def conv_bn_relu_layer(x_nwc, params, stride, *, out_dtype, eps=1e-5):
    # x_nwc: (B, L, C_in_pad) bf16 NWC (channels possibly zero-padded) -> (B, L_out, C_out_pad)
    w, b_conv, gamma, beta, r_mean, r_var = params
    C_out, C_in_w, k = w.shape
    pad = k // 2
    B, L, C_in = x_nwc.shape
    l_out = (L + 2 * pad - k) // stride + 1
    C_out_pad = _round_up(C_out, 128)
    tn = min(256, C_out_pad)

    # Fold BN (eval-mode running stats) into per-channel scale/bias; zero-pad lanes.
    scale = gamma / jnp.sqrt(r_var + eps)
    bias = (b_conv - r_mean) * scale + beta
    s_pad = jnp.zeros((1, C_out_pad), jnp.float32).at[:, :C_out].set(scale[None, :])
    b_pad = jnp.zeros((1, C_out_pad), jnp.float32).at[:, :C_out].set(bias[None, :])

    # Per-tap weight matrices: w_tap[j][c_in, c_out] = w[c_out, c_in, j]; zero-padded.
    w_taps = jnp.transpose(w, (2, 1, 0)).astype(jnp.bfloat16)          # (k, C_in_w, C_out)
    w_pad = jnp.zeros((k, C_in, C_out_pad), jnp.bfloat16)
    w_pad = w_pad.at[:, :C_in_w, :C_out].set(w_taps)

    # Stride-phase decomposition keeps all in-kernel reads contiguous.
    x_phases = _phase_split(x_nwc, k, stride, pad, l_out)              # (stride, B, L_phase, C_in)
    l_phase = x_phases.shape[2]

    kernel = functools.partial(_conv_bn_relu_kernel, k=k, stride=stride, l_out=l_out)
    out = pl.pallas_call(
        kernel,
        out_shape=jax.ShapeDtypeStruct((B, l_out, C_out_pad), out_dtype),
        grid_spec=pl.GridSpec(
            grid=(B, C_out_pad // tn),
            in_specs=[
                pl.BlockSpec((stride, 1, l_phase, C_in), lambda b, j: (0, b, 0, 0)),
                pl.BlockSpec((k, C_in, tn), lambda b, j: (0, 0, j)),
                pl.BlockSpec((1, tn), lambda b, j: (0, j)),
                pl.BlockSpec((1, tn), lambda b, j: (0, j)),
            ],
            out_specs=pl.BlockSpec((1, l_out, tn), lambda b, j: (b, 0, j)),
        ),
        compiler_params=pltpu.CompilerParams(
            dimension_semantics=("parallel", "parallel")),
    )(x_phases, w_pad, s_pad, b_pad)
    return out


def conv_feature_extractor(x_ncw, all_params, strides):
    # Module boundary keeps the PyTorch NCW layout; convert to NWC bf16 once.
    x = jnp.transpose(x_ncw, (0, 2, 1)).astype(jnp.bfloat16)
    n_layers = len(all_params)
    for i, (params, s) in enumerate(zip(all_params, strides)):
        out_dtype = jnp.float32 if i == n_layers - 1 else jnp.bfloat16
        x = conv_bn_relu_layer(x, params, s, out_dtype=out_dtype)
    C_last = all_params[-1][0].shape[0]
    x = x[..., :C_last]                                 # drop lane padding
    return jnp.transpose(x, (0, 2, 1))                  # back to NCW like PyTorch


# ------------------------ deterministic parameter init ------------------------

def init_params(n_channels, conv_channels, kernel_sizes, key):
    params = []
    in_c = n_channels
    for out_c, k in zip(conv_channels, kernel_sizes):
        key, kw, kb = jax.random.split(key, 3)
        fan_in = in_c * k
        bound = 1.0 / math.sqrt(fan_in)
        w = jax.random.uniform(kw, (out_c, in_c, k), jnp.float32, -bound, bound)
        b = jax.random.uniform(kb, (out_c,), jnp.float32, -bound, bound)
        gamma = jnp.ones((out_c,), jnp.float32)
        beta = jnp.zeros((out_c,), jnp.float32)
        r_mean = jnp.zeros((out_c,), jnp.float32)
        r_var = jnp.ones((out_c,), jnp.float32)
        params.append((w, b, gamma, beta, r_mean, r_var))
        in_c = out_c
    return params


# ------------------------------ reference check -------------------------------

def reference_forward(x, all_params, strides, eps=1e-5):
    for (w, b, gamma, beta, r_mean, r_var), s in zip(all_params, strides):
        k = w.shape[2]
        pad = k // 2
        y = jax.lax.conv_general_dilated(
            x, w, window_strides=(s,), padding=[(pad, pad)],
            dimension_numbers=("NCH", "OIH", "NCH"))
        y = y + b[None, :, None]
        y = (y - r_mean[None, :, None]) / jnp.sqrt(r_var[None, :, None] + eps)
        y = gamma[None, :, None] * y + beta[None, :, None]
        x = jnp.maximum(y, 0.0)
    return x


# ----------------------------------- main --------------------------------------

if __name__ == "__main__":
    n_channels = 4
    conv_channels = [64, 128, 256]
    kernel_sizes = [7, 5, 3]
    strides = [2, 2, 2]

    key = jax.random.PRNGKey(0)
    key, kx = jax.random.split(key)
    B, L = 2, 16
    x = jax.random.normal(kx, (B, n_channels, L), jnp.float32)   # NCW, like PyTorch

    params = init_params(n_channels, conv_channels, kernel_sizes, key)

    fwd = jax.jit(functools.partial(conv_feature_extractor, strides=tuple(strides)))
    out = jax.block_until_ready(fwd(x, params))

    ref = jax.block_until_ready(reference_forward(x, params, strides))
    assert out.shape == ref.shape == (B, conv_channels[-1], 2), out.shape
    # bf16 MXU inputs / bf16 inter-layer activations with f32 accumulation ->
    # loosened tolerance vs the f32 reference.
    assert jnp.allclose(out, ref, atol=5e-2, rtol=5e-2), float(jnp.abs(out - ref).max())

    print("KERNEL_OK")
</pallas_src>

<mosaic_0001>
module attributes {stable_mosaic.version = 11 : i64} {
  func.func @_conv_bn_relu_kernel(%arg0: i32, %arg1: i32, %arg2: memref<2x1x6x128xbf16, #tpu.memory_space<vmem>>, %arg3: memref<5x128x128xbf16, #tpu.memory_space<vmem>>, %arg4: memref<1x128xf32, #tpu.memory_space<vmem>>, %arg5: memref<1x128xf32, #tpu.memory_space<vmem>>, %arg6: memref<1x4x128xbf16, #tpu.memory_space<vmem>>) attributes {dimension_semantics = [#tpu.dimension_semantics<parallel>, #tpu.dimension_semantics<parallel>], iteration_bounds = array<i64: 2, 1>, scalar_prefetch = 0 : i64, scratch_operands = 0 : i64, tpu.core_type = #tpu.core_type<tc>, window_params = [{transform_indices = @transform_0, window_bounds = array<i64: 2, 1, 6, 128>}, {transform_indices = @transform_1, window_bounds = array<i64: 5, 128, 128>}, {transform_indices = @transform_2, window_bounds = array<i64: 1, 128>}, {transform_indices = @transform_3, window_bounds = array<i64: 1, 128>}, {transform_indices = @transform_4, window_bounds = array<i64: 1, 4, 128>}]} {
    %c0 = arith.constant 0 : index
    %c0_0 = arith.constant 0 : index
    %c0_1 = arith.constant 0 : index
    %c0_2 = arith.constant 0 : index
    %0 = vector.load %arg2[%c0, %c0_0, %c0_1, %c0_2] : memref<2x1x6x128xbf16, #tpu.memory_space<vmem>>, vector<1x1x4x128xbf16>
    %1 = vector.shape_cast %0 : vector<1x1x4x128xbf16> to vector<4x128xbf16>
    %c0_3 = arith.constant 0 : index
    %c0_4 = arith.constant 0 : index
    %c0_5 = arith.constant 0 : index
    %2 = vector.load %arg3[%c0_3, %c0_4, %c0_5] : memref<5x128x128xbf16, #tpu.memory_space<vmem>>, vector<1x128x128xbf16>
    %3 = vector.shape_cast %2 : vector<1x128x128xbf16> to vector<128x128xbf16>
    %cst = arith.constant dense<0.000000e+00> : vector<4x128xf32>
    %4 = tpu.matmul %1, %3, %cst {dimension_numbers = #tpu.dot_dimension_numbers<[1], [0], [0], [1], [0, 0, 1, 1], [], []>} : vector<4x128xbf16>, vector<128x128xbf16>, vector<4x128xf32> -> vector<4x128xf32>
    %c1 = arith.constant 1 : index
    %c0_6 = arith.constant 0 : index
    %c0_7 = arith.constant 0 : index
    %c0_8 = arith.constant 0 : index
    %5 = vector.load %arg2[%c1, %c0_6, %c0_7, %c0_8] : memref<2x1x6x128xbf16, #tpu.memory_space<vmem>>, vector<1x1x4x128xbf16>
    %6 = vector.shape_cast %5 : vector<1x1x4x128xbf16> to vector<4x128xbf16>
    %c1_9 = arith.constant 1 : index
    %c0_10 = arith.constant 0 : index
    %c0_11 = arith.constant 0 : index
    %7 = vector.load %arg3[%c1_9, %c0_10, %c0_11] : memref<5x128x128xbf16, #tpu.memory_space<vmem>>, vector<1x128x128xbf16>
    %8 = vector.shape_cast %7 : vector<1x128x128xbf16> to vector<128x128xbf16>
    %cst_12 = arith.constant dense<0.000000e+00> : vector<4x128xf32>
    %9 = tpu.matmul %6, %8, %cst_12 {dimension_numbers = #tpu.dot_dimension_numbers<[1], [0], [0], [1], [0, 0, 1, 1], [], []>} : vector<4x128xbf16>, vector<128x128xbf16>, vector<4x128xf32> -> vector<4x128xf32>
    %10 = arith.addf %4, %9 : vector<4x128xf32>
    %c0_13 = arith.constant 0 : index
    %c0_14 = arith.constant 0 : index
    %c1_15 = arith.constant 1 : index
    %c0_16 = arith.constant 0 : index
    %11 = vector.load %arg2[%c0_13, %c0_14, %c1_15, %c0_16] : memref<2x1x6x128xbf16, #tpu.memory_space<vmem>>, vector<1x1x4x128xbf16>
    %12 = vector.shape_cast %11 : vector<1x1x4x128xbf16> to vector<4x128xbf16>
    %c2 = arith.constant 2 : index
    %c0_17 = arith.constant 0 : index
    %c0_18 = arith.constant 0 : index
    %13 = vector.load %arg3[%c2, %c0_17, %c0_18] : memref<5x128x128xbf16, #tpu.memory_space<vmem>>, vector<1x128x128xbf16>
    %14 = vector.shape_cast %13 : vector<1x128x128xbf16> to vector<128x128xbf16>
    %cst_19 = arith.constant dense<0.000000e+00> : vector<4x128xf32>
    %15 = tpu.matmul %12, %14, %cst_19 {dimension_numbers = #tpu.dot_dimension_numbers<[1], [0], [0], [1], [0, 0, 1, 1], [], []>} : vector<4x128xbf16>, vector<128x128xbf16>, vector<4x128xf32> -> vector<4x128xf32>
    %16 = arith.addf %10, %15 : vector<4x128xf32>
    %c1_20 = arith.constant 1 : index
    %c0_21 = arith.constant 0 : index
    %c1_22 = arith.constant 1 : index
    %c0_23 = arith.constant 0 : index
    %17 = vector.load %arg2[%c1_20, %c0_21, %c1_22, %c0_23] : memref<2x1x6x128xbf16, #tpu.memory_space<vmem>>, vector<1x1x4x128xbf16>
    %18 = vector.shape_cast %17 : vector<1x1x4x128xbf16> to vector<4x128xbf16>
    %c3 = arith.constant 3 : index
    %c0_24 = arith.constant 0 : index
    %c0_25 = arith.constant 0 : index
    %19 = vector.load %arg3[%c3, %c0_24, %c0_25] : memref<5x128x128xbf16, #tpu.memory_space<vmem>>, vector<1x128x128xbf16>
    %20 = vector.shape_cast %19 : vector<1x128x128xbf16> to vector<128x128xbf16>
    %cst_26 = arith.constant dense<0.000000e+00> : vector<4x128xf32>
    %21 = tpu.matmul %18, %20, %cst_26 {dimension_numbers = #tpu.dot_dimension_numbers<[1], [0], [0], [1], [0, 0, 1, 1], [], []>} : vector<4x128xbf16>, vector<128x128xbf16>, vector<4x128xf32> -> vector<4x128xf32>
    %22 = arith.addf %16, %21 : vector<4x128xf32>
    %c0_27 = arith.constant 0 : index
    %c0_28 = arith.constant 0 : index
    %c2_29 = arith.constant 2 : index
    %c0_30 = arith.constant 0 : index
    %23 = vector.load %arg2[%c0_27, %c0_28, %c2_29, %c0_30] : memref<2x1x6x128xbf16, #tpu.memory_space<vmem>>, vector<1x1x4x128xbf16>
    %24 = vector.shape_cast %23 : vector<1x1x4x128xbf16> to vector<4x128xbf16>
    %c4 = arith.constant 4 : index
    %c0_31 = arith.constant 0 : index
    %c0_32 = arith.constant 0 : index
    %25 = vector.load %arg3[%c4, %c0_31, %c0_32] : memref<5x128x128xbf16, #tpu.memory_space<vmem>>, vector<1x128x128xbf16>
    %26 = vector.shape_cast %25 : vector<1x128x128xbf16> to vector<128x128xbf16>
    %cst_33 = arith.constant dense<0.000000e+00> : vector<4x128xf32>
    %27 = tpu.matmul %24, %26, %cst_33 {dimension_numbers = #tpu.dot_dimension_numbers<[1], [0], [0], [1], [0, 0, 1, 1], [], []>} : vector<4x128xbf16>, vector<128x128xbf16>, vector<4x128xf32> -> vector<4x128xf32>
    %28 = arith.addf %22, %27 : vector<4x128xf32>
    %c0_34 = arith.constant 0 : index
    %c0_35 = arith.constant 0 : index
    %29 = vector.load %arg4[%c0_34, %c0_35] : memref<1x128xf32, #tpu.memory_space<vmem>>, vector<1x128xf32>
    %30 = vector.broadcast %29 : vector<1x128xf32> to vector<4x128xf32>
    %31 = arith.mulf %28, %30 : vector<4x128xf32>
    %c0_36 = arith.constant 0 : index
    %c0_37 = arith.constant 0 : index
    %32 = vector.load %arg5[%c0_36, %c0_37] : memref<1x128xf32, #tpu.memory_space<vmem>>, vector<1x128xf32>
    %33 = vector.broadcast %32 : vector<1x128xf32> to vector<4x128xf32>
    %34 = arith.addf %31, %33 : vector<4x128xf32>
    %cst_38 = arith.constant 0.000000e+00 : f32
    %35 = vector.broadcast %cst_38 : f32 to vector<4x128xf32>
    %36 = arith.maximumf %34, %35 : vector<4x128xf32>
    %37 = arith.truncf %36 : vector<4x128xf32> to vector<4x128xbf16>
    %c0_39 = arith.constant 0 : index
    %c0_40 = arith.constant 0 : index
    %c0_41 = arith.constant 0 : index
    %38 = vector.load %arg6[%c0_39, %c0_40, %c0_41] : memref<1x4x128xbf16, #tpu.memory_space<vmem>>, vector<1x4x128xbf16>
    %39 = vector.shape_cast %38 : vector<1x4x128xbf16> to vector<4x128xbf16>
    %40 = vector.shape_cast %37 : vector<4x128xbf16> to vector<1x4x128xbf16>
    tpu.vector_store %arg6[%c0_39, %c0_40, %c0_41], %40 {strides = array<i32>} : memref<1x4x128xbf16, #tpu.memory_space<vmem>>, vector<1x4x128xbf16>,
    return
  }
  func.func @transform_0(%arg0: i32, %arg1: i32) -> (i32, i32, i32, i32) {
    %c0_i32 = arith.constant 0 : i32
    %c0_i32_0 = arith.constant 0 : i32
    %c0_i32_1 = arith.constant 0 : i32
    %c0_i32_2 = arith.constant 0 : i32
    return %c0_i32, %arg0, %c0_i32_0, %c0_i32_1 : i32, i32, i32, i32
  }
  func.func @transform_1(%arg0: i32, %arg1: i32) -> (i32, i32, i32) {
    %c0_i32 = arith.constant 0 : i32
    %c0_i32_0 = arith.constant 0 : i32
    %c0_i32_1 = arith.constant 0 : i32
    return %c0_i32, %c0_i32_0, %arg1 : i32, i32, i32
  }
  func.func @transform_2(%arg0: i32, %arg1: i32) -> (i32, i32) {
    %c0_i32 = arith.constant 0 : i32
    %c0_i32_0 = arith.constant 0 : i32
    return %c0_i32, %arg1 : i32, i32
  }
  func.func @transform_3(%arg0: i32, %arg1: i32) -> (i32, i32) {
    %c0_i32 = arith.constant 0 : i32
    %c0_i32_0 = arith.constant 0 : i32
    return %c0_i32, %arg1 : i32, i32
  }
  func.func @transform_4(%arg0: i32, %arg1: i32) -> (i32, i32, i32) {
    %c0_i32 = arith.constant 0 : i32
    %c0_i32_0 = arith.constant 0 : i32
    return %arg0, %c0_i32, %arg1 : i32, i32, i32
  }
}

module attributes {stable_mosaic.version = 11 : i64} {
  func.func @_conv_bn_relu_kernel(%arg0: i32, %arg1: i32, %arg2: memref<2x1x11x4xbf16, #tpu.memory_space<vmem>>, %arg3: memref<7x4x128xbf16, #tpu.memory_space<vmem>>, %arg4: memref<1x128xf32, #tpu.memory_space<vmem>>, %arg5: memref<1x128xf32, #tpu.memory_space<vmem>>, %arg6: memref<1x8x128xbf16, #tpu.memory_space<vmem>>) attributes {dimension_semantics = [#tpu.dimension_semantics<parallel>, #tpu.dimension_semantics<parallel>], iteration_bounds = array<i64: 2, 1>, scalar_prefetch = 0 : i64, scratch_operands = 0 : i64, tpu.core_type = #tpu.core_type<tc>, window_params = [{transform_indices = @transform_0, window_bounds = array<i64: 2, 1, 11, 4>}, {transform_indices = @transform_1, window_bounds = array<i64: 7, 4, 128>}, {transform_indices = @transform_2, window_bounds = array<i64: 1, 128>}, {transform_indices = @transform_3, window_bounds = array<i64: 1, 128>}, {transform_indices = @transform_4, window_bounds = array<i64: 1, 8, 128>}]} {
    %c0 = arith.constant 0 : index
    %c0_0 = arith.constant 0 : index
    %c0_1 = arith.constant 0 : index
    %c0_2 = arith.constant 0 : index
    %0 = vector.load %arg2[%c0, %c0_0, %c0_1, %c0_2] : memref<2x1x11x4xbf16, #tpu.memory_space<vmem>>, vector<1x1x8x4xbf16>
    %1 = vector.shape_cast %0 : vector<1x1x8x4xbf16> to vector<8x4xbf16>
    %c0_3 = arith.constant 0 : index
    %c0_4 = arith.constant 0 : index
    %c0_5 = arith.constant 0 : index
    %2 = vector.load %arg3[%c0_3, %c0_4, %c0_5] : memref<7x4x128xbf16, #tpu.memory_space<vmem>>, vector<1x4x128xbf16>
    %3 = vector.shape_cast %2 : vector<1x4x128xbf16> to vector<4x128xbf16>
    %cst = arith.constant dense<0.000000e+00> : vector<8x128xf32>
    %4 = tpu.matmul %1, %3, %cst {dimension_numbers = #tpu.dot_dimension_numbers<[1], [0], [0], [1], [0, 0, 1, 1], [], []>} : vector<8x4xbf16>, vector<4x128xbf16>, vector<8x128xf32> -> vector<8x128xf32>
    %c1 = arith.constant 1 : index
    %c0_6 = arith.constant 0 : index
    %c0_7 = arith.constant 0 : index
    %c0_8 = arith.constant 0 : index
    %5 = vector.load %arg2[%c1, %c0_6, %c0_7, %c0_8] : memref<2x1x11x4xbf16, #tpu.memory_space<vmem>>, vector<1x1x8x4xbf16>
    %6 = vector.shape_cast %5 : vector<1x1x8x4xbf16> to vector<8x4xbf16>
    %c1_9 = arith.constant 1 : index
    %c0_10 = arith.constant 0 : index
    %c0_11 = arith.constant 0 : index
    %7 = vector.load %arg3[%c1_9, %c0_10, %c0_11] : memref<7x4x128xbf16, #tpu.memory_space<vmem>>, vector<1x4x128xbf16>
    %8 = vector.shape_cast %7 : vector<1x4x128xbf16> to vector<4x128xbf16>
    %cst_12 = arith.constant dense<0.000000e+00> : vector<8x128xf32>
    %9 = tpu.matmul %6, %8, %cst_12 {dimension_numbers = #tpu.dot_dimension_numbers<[1], [0], [0], [1], [0, 0, 1, 1], [], []>} : vector<8x4xbf16>, vector<4x128xbf16>, vector<8x128xf32> -> vector<8x128xf32>
    %10 = arith.addf %4, %9 : vector<8x128xf32>
    %c0_13 = arith.constant 0 : index
    %c0_14 = arith.constant 0 : index
    %c1_15 = arith.constant 1 : index
    %c0_16 = arith.constant 0 : index
    %11 = vector.load %arg2[%c0_13, %c0_14, %c1_15, %c0_16] : memref<2x1x11x4xbf16, #tpu.memory_space<vmem>>, vector<1x1x8x4xbf16>
    %12 = vector.shape_cast %11 : vector<1x1x8x4xbf16> to vector<8x4xbf16>
    %c2 = arith.constant 2 : index
    %c0_17 = arith.constant 0 : index
    %c0_18 = arith.constant 0 : index
    %13 = vector.load %arg3[%c2, %c0_17, %c0_18] : memref<7x4x128xbf16, #tpu.memory_space<vmem>>, vector<1x4x128xbf16>
    %14 = vector.shape_cast %13 : vector<1x4x128xbf16> to vector<4x128xbf16>
    %cst_19 = arith.constant dense<0.000000e+00> : vector<8x128xf32>
    %15 = tpu.matmul %12, %14, %cst_19 {dimension_numbers = #tpu.dot_dimension_numbers<[1], [0], [0], [1], [0, 0, 1, 1], [], []>} : vector<8x4xbf16>, vector<4x128xbf16>, vector<8x128xf32> -> vector<8x128xf32>
    %16 = arith.addf %10, %15 : vector<8x128xf32>
    %c1_20 = arith.constant 1 : index
    %c0_21 = arith.constant 0 : index
    %c1_22 = arith.constant 1 : index
    %c0_23 = arith.constant 0 : index
    %17 = vector.load %arg2[%c1_20, %c0_21, %c1_22, %c0_23] : memref<2x1x11x4xbf16, #tpu.memory_space<vmem>>, vector<1x1x8x4xbf16>
    %18 = vector.shape_cast %17 : vector<1x1x8x4xbf16> to vector<8x4xbf16>
    %c3 = arith.constant 3 : index
    %c0_24 = arith.constant 0 : index
    %c0_25 = arith.constant 0 : index
    %19 = vector.load %arg3[%c3, %c0_24, %c0_25] : memref<7x4x128xbf16, #tpu.memory_space<vmem>>, vector<1x4x128xbf16>
    %20 = vector.shape_cast %19 : vector<1x4x128xbf16> to vector<4x128xbf16>
    %cst_26 = arith.constant dense<0.000000e+00> : vector<8x128xf32>
    %21 = tpu.matmul %18, %20, %cst_26 {dimension_numbers = #tpu.dot_dimension_numbers<[1], [0], [0], [1], [0, 0, 1, 1], [], []>} : vector<8x4xbf16>, vector<4x128xbf16>, vector<8x128xf32> -> vector<8x128xf32>
    %22 = arith.addf %16, %21 : vector<8x128xf32>
    %c0_27 = arith.constant 0 : index
    %c0_28 = arith.constant 0 : index
    %c2_29 = arith.constant 2 : index
    %c0_30 = arith.constant 0 : index
    %23 = vector.load %arg2[%c0_27, %c0_28, %c2_29, %c0_30] : memref<2x1x11x4xbf16, #tpu.memory_space<vmem>>, vector<1x1x8x4xbf16>
    %24 = vector.shape_cast %23 : vector<1x1x8x4xbf16> to vector<8x4xbf16>
    %c4 = arith.constant 4 : index
    %c0_31 = arith.constant 0 : index
    %c0_32 = arith.constant 0 : index
    %25 = vector.load %arg3[%c4, %c0_31, %c0_32] : memref<7x4x128xbf16, #tpu.memory_space<vmem>>, vector<1x4x128xbf16>
    %26 = vector.shape_cast %25 : vector<1x4x128xbf16> to vector<4x128xbf16>
    %cst_33 = arith.constant dense<0.000000e+00> : vector<8x128xf32>
    %27 = tpu.matmul %24, %26, %cst_33 {dimension_numbers = #tpu.dot_dimension_numbers<[1], [0], [0], [1], [0, 0, 1, 1], [], []>} : vector<8x4xbf16>, vector<4x128xbf16>, vector<8x128xf32> -> vector<8x128xf32>
    %28 = arith.addf %22, %27 : vector<8x128xf32>
    %c1_34 = arith.constant 1 : index
    %c0_35 = arith.constant 0 : index
    %c2_36 = arith.constant 2 : index
    %c0_37 = arith.constant 0 : index
    %29 = vector.load %arg2[%c1_34, %c0_35, %c2_36, %c0_37] : memref<2x1x11x4xbf16, #tpu.memory_space<vmem>>, vector<1x1x8x4xbf16>
    %30 = vector.shape_cast %29 : vector<1x1x8x4xbf16> to vector<8x4xbf16>
    %c5 = arith.constant 5 : index
    %c0_38 = arith.constant 0 : index
    %c0_39 = arith.constant 0 : index
    %31 = vector.load %arg3[%c5, %c0_38, %c0_39] : memref<7x4x128xbf16, #tpu.memory_space<vmem>>, vector<1x4x128xbf16>
    %32 = vector.shape_cast %31 : vector<1x4x128xbf16> to vector<4x128xbf16>
    %cst_40 = arith.constant dense<0.000000e+00> : vector<8x128xf32>
    %33 = tpu.matmul %30, %32, %cst_40 {dimension_numbers = #tpu.dot_dimension_numbers<[1], [0], [0], [1], [0, 0, 1, 1], [], []>} : vector<8x4xbf16>, vector<4x128xbf16>, vector<8x128xf32> -> vector<8x128xf32>
    %34 = arith.addf %28, %33 : vector<8x128xf32>
    %c0_41 = arith.constant 0 : index
    %c0_42 = arith.constant 0 : index
    %c3_43 = arith.constant 3 : index
    %c0_44 = arith.constant 0 : index
    %35 = vector.load %arg2[%c0_41, %c0_42, %c3_43, %c0_44] : memref<2x1x11x4xbf16, #tpu.memory_space<vmem>>, vector<1x1x8x4xbf16>
    %36 = vector.shape_cast %35 : vector<1x1x8x4xbf16> to vector<8x4xbf16>
    %c6 = arith.constant 6 : index
    %c0_45 = arith.constant 0 : index
    %c0_46 = arith.constant 0 : index
    %37 = vector.load %arg3[%c6, %c0_45, %c0_46] : memref<7x4x128xbf16, #tpu.memory_space<vmem>>, vector<1x4x128xbf16>
    %38 = vector.shape_cast %37 : vector<1x4x128xbf16> to vector<4x128xbf16>
    %cst_47 = arith.constant dense<0.000000e+00> : vector<8x128xf32>
    %39 = tpu.matmul %36, %38, %cst_47 {dimension_numbers = #tpu.dot_dimension_numbers<[1], [0], [0], [1], [0, 0, 1, 1], [], []>} : vector<8x4xbf16>, vector<4x128xbf16>, vector<8x128xf32> -> vector<8x128xf32>
    %40 = arith.addf %34, %39 : vector<8x128xf32>
    %c0_48 = arith.constant 0 : index
    %c0_49 = arith.constant 0 : index
    %41 = vector.load %arg4[%c0_48, %c0_49] : memref<1x128xf32, #tpu.memory_space<vmem>>, vector<1x128xf32>
    %42 = vector.broadcast %41 : vector<1x128xf32> to vector<8x128xf32>
    %43 = arith.mulf %40, %42 : vector<8x128xf32>
    %c0_50 = arith.constant 0 : index
    %c0_51 = arith.constant 0 : index
    %44 = vector.load %arg5[%c0_50, %c0_51] : memref<1x128xf32, #tpu.memory_space<vmem>>, vector<1x128xf32>
    %45 = vector.broadcast %44 : vector<1x128xf32> to vector<8x128xf32>
    %46 = arith.addf %43, %45 : vector<8x128xf32>
    %cst_52 = arith.constant 0.000000e+00 : f32
    %47 = vector.broadcast %cst_52 : f32 to vector<8x128xf32>
    %48 = arith.maximumf %46, %47 : vector<8x128xf32>
    %49 = arith.truncf %48 : vector<8x128xf32> to vector<8x128xbf16>
    %c0_53 = arith.constant 0 : index
    %c0_54 = arith.constant 0 : index
    %c0_55 = arith.constant 0 : index
    %50 = vector.load %arg6[%c0_53, %c0_54, %c0_55] : memref<1x8x128xbf16, #tpu.memory_space<vmem>>, vector<1x8x128xbf16>
    %51 = vector.shape_cast %50 : vector<1x8x128xbf16> to vector<8x128xbf16>
    %52 = vector.shape_cast %49 : vector<8x128xbf16> to vector<1x8x128xbf16>
    tpu.vector_store %arg6[%c0_53, %c0_54, %c0_55], %52 {strides = array<i32>} : memref<1x8x128xbf16, #tpu.memory_space<vmem>>, vector<1x8x128xbf16>,
    return
  }
  func.func @transform_0(%arg0: i32, %arg1: i32) -> (i32, i32, i32, i32) {
    %c0_i32 = arith.constant 0 : i32
    %c0_i32_0 = arith.constant 0 : i32
    %c0_i32_1 = arith.constant 0 : i32
    %c0_i32_2 = arith.constant 0 : i32
    return %c0_i32, %arg0, %c0_i32_0, %c0_i32_1 : i32, i32, i32, i32
  }
  func.func @transform_1(%arg0: i32, %arg1: i32) -> (i32, i32, i32) {
    %c0_i32 = arith.constant 0 : i32
    %c0_i32_0 = arith.constant 0 : i32
    %c0_i32_1 = arith.constant 0 : i32
    return %c0_i32, %c0_i32_0, %arg1 : i32, i32, i32
  }
  func.func @transform_2(%arg0: i32, %arg1: i32) -> (i32, i32) {
    %c0_i32 = arith.constant 0 : i32
    %c0_i32_0 = arith.constant 0 : i32
    return %c0_i32, %arg1 : i32, i32
  }
  func.func @transform_3(%arg0: i32, %arg1: i32) -> (i32, i32) {
    %c0_i32 = arith.constant 0 : i32
    %c0_i32_0 = arith.constant 0 : i32
    return %c0_i32, %arg1 : i32, i32
  }
  func.func @transform_4(%arg0: i32, %arg1: i32) -> (i32, i32, i32) {
    %c0_i32 = arith.constant 0 : i32
    %c0_i32_0 = arith.constant 0 : i32
    return %arg0, %c0_i32, %arg1 : i32, i32, i32
  }
}

module attributes {stable_mosaic.version = 11 : i64} {
  func.func @_conv_bn_relu_kernel(%arg0: i32, %arg1: i32, %arg2: memref<2x1x3x128xbf16, #tpu.memory_space<vmem>>, %arg3: memref<3x128x256xbf16, #tpu.memory_space<vmem>>, %arg4: memref<1x256xf32, #tpu.memory_space<vmem>>, %arg5: memref<1x256xf32, #tpu.memory_space<vmem>>, %arg6: memref<1x2x256xf32, #tpu.memory_space<vmem>>) attributes {dimension_semantics = [#tpu.dimension_semantics<parallel>, #tpu.dimension_semantics<parallel>], iteration_bounds = array<i64: 2, 1>, scalar_prefetch = 0 : i64, scratch_operands = 0 : i64, tpu.core_type = #tpu.core_type<tc>, window_params = [{transform_indices = @transform_0, window_bounds = array<i64: 2, 1, 3, 128>}, {transform_indices = @transform_1, window_bounds = array<i64: 3, 128, 256>}, {transform_indices = @transform_2, window_bounds = array<i64: 1, 256>}, {transform_indices = @transform_3, window_bounds = array<i64: 1, 256>}, {transform_indices = @transform_4, window_bounds = array<i64: 1, 2, 256>}]} {
    %c0 = arith.constant 0 : index
    %c0_0 = arith.constant 0 : index
    %c0_1 = arith.constant 0 : index
    %c0_2 = arith.constant 0 : index
    %0 = vector.load %arg2[%c0, %c0_0, %c0_1, %c0_2] : memref<2x1x3x128xbf16, #tpu.memory_space<vmem>>, vector<1x1x2x128xbf16>
    %1 = vector.shape_cast %0 : vector<1x1x2x128xbf16> to vector<2x128xbf16>
    %c0_3 = arith.constant 0 : index
    %c0_4 = arith.constant 0 : index
    %c0_5 = arith.constant 0 : index
    %2 = vector.load %arg3[%c0_3, %c0_4, %c0_5] : memref<3x128x256xbf16, #tpu.memory_space<vmem>>, vector<1x128x256xbf16>
    %3 = vector.shape_cast %2 : vector<1x128x256xbf16> to vector<128x256xbf16>
    %cst = arith.constant dense<0.000000e+00> : vector<2x256xf32>
    %4 = tpu.matmul %1, %3, %cst {dimension_numbers = #tpu.dot_dimension_numbers<[1], [0], [0], [1], [0, 0, 1, 1], [], []>} : vector<2x128xbf16>, vector<128x256xbf16>, vector<2x256xf32> -> vector<2x256xf32>
    %c1 = arith.constant 1 : index
    %c0_6 = arith.constant 0 : index
    %c0_7 = arith.constant 0 : index
    %c0_8 = arith.constant 0 : index
    %5 = vector.load %arg2[%c1, %c0_6, %c0_7, %c0_8] : memref<2x1x3x128xbf16, #tpu.memory_space<vmem>>, vector<1x1x2x128xbf16>
    %6 = vector.shape_cast %5 : vector<1x1x2x128xbf16> to vector<2x128xbf16>
    %c1_9 = arith.constant 1 : index
    %c0_10 = arith.constant 0 : index
    %c0_11 = arith.constant 0 : index
    %7 = vector.load %arg3[%c1_9, %c0_10, %c0_11] : memref<3x128x256xbf16, #tpu.memory_space<vmem>>, vector<1x128x256xbf16>
    %8 = vector.shape_cast %7 : vector<1x128x256xbf16> to vector<128x256xbf16>
    %cst_12 = arith.constant dense<0.000000e+00> : vector<2x256xf32>
    %9 = tpu.matmul %6, %8, %cst_12 {dimension_numbers = #tpu.dot_dimension_numbers<[1], [0], [0], [1], [0, 0, 1, 1], [], []>} : vector<2x128xbf16>, vector<128x256xbf16>, vector<2x256xf32> -> vector<2x256xf32>
    %10 = arith.addf %4, %9 : vector<2x256xf32>
    %c0_13 = arith.constant 0 : index
    %c0_14 = arith.constant 0 : index
    %c1_15 = arith.constant 1 : index
    %c0_16 = arith.constant 0 : index
    %11 = vector.load %arg2[%c0_13, %c0_14, %c1_15, %c0_16] : memref<2x1x3x128xbf16, #tpu.memory_space<vmem>>, vector<1x1x2x128xbf16>
    %12 = vector.shape_cast %11 : vector<1x1x2x128xbf16> to vector<2x128xbf16>
    %c2 = arith.constant 2 : index
    %c0_17 = arith.constant 0 : index
    %c0_18 = arith.constant 0 : index
    %13 = vector.load %arg3[%c2, %c0_17, %c0_18] : memref<3x128x256xbf16, #tpu.memory_space<vmem>>, vector<1x128x256xbf16>
    %14 = vector.shape_cast %13 : vector<1x128x256xbf16> to vector<128x256xbf16>
    %cst_19 = arith.constant dense<0.000000e+00> : vector<2x256xf32>
    %15 = tpu.matmul %12, %14, %cst_19 {dimension_numbers = #tpu.dot_dimension_numbers<[1], [0], [0], [1], [0, 0, 1, 1], [], []>} : vector<2x128xbf16>, vector<128x256xbf16>, vector<2x256xf32> -> vector<2x256xf32>
    %16 = arith.addf %10, %15 : vector<2x256xf32>
    %c0_20 = arith.constant 0 : index
    %c0_21 = arith.constant 0 : index
    %17 = vector.load %arg4[%c0_20, %c0_21] : memref<1x256xf32, #tpu.memory_space<vmem>>, vector<1x256xf32>
    %18 = vector.broadcast %17 : vector<1x256xf32> to vector<2x256xf32>
    %19 = arith.mulf %16, %18 : vector<2x256xf32>
    %c0_22 = arith.constant 0 : index
    %c0_23 = arith.constant 0 : index
    %20 = vector.load %arg5[%c0_22, %c0_23] : memref<1x256xf32, #tpu.memory_space<vmem>>, vector<1x256xf32>
    %21 = vector.broadcast %20 : vector<1x256xf32> to vector<2x256xf32>
    %22 = arith.addf %19, %21 : vector<2x256xf32>
    %cst_24 = arith.constant 0.000000e+00 : f32
    %23 = vector.broadcast %cst_24 : f32 to vector<2x256xf32>
    %24 = arith.maximumf %22, %23 : vector<2x256xf32>
    %c0_25 = arith.constant 0 : index
    %c0_26 = arith.constant 0 : index
    %c0_27 = arith.constant 0 : index
    %25 = vector.load %arg6[%c0_25, %c0_26, %c0_27] : memref<1x2x256xf32, #tpu.memory_space<vmem>>, vector<1x2x256xf32>
    %26 = vector.shape_cast %25 : vector<1x2x256xf32> to vector<2x256xf32>
    %27 = vector.shape_cast %24 : vector<2x256xf32> to vector<1x2x256xf32>
    tpu.vector_store %arg6[%c0_25, %c0_26, %c0_27], %27 {strides = array<i32>} : memref<1x2x256xf32, #tpu.memory_space<vmem>>, vector<1x2x256xf32>,
    return
  }
  func.func @transform_0(%arg0: i32, %arg1: i32) -> (i32, i32, i32, i32) {
    %c0_i32 = arith.constant 0 : i32
    %c0_i32_0 = arith.constant 0 : i32
    %c0_i32_1 = arith.constant 0 : i32
    %c0_i32_2 = arith.constant 0 : i32
    return %c0_i32, %arg0, %c0_i32_0, %c0_i32_1 : i32, i32, i32, i32
  }
  func.func @transform_1(%arg0: i32, %arg1: i32) -> (i32, i32, i32) {
    %c0_i32 = arith.constant 0 : i32
    %c0_i32_0 = arith.constant 0 : i32
    %c0_i32_1 = arith.constant 0 : i32
    return %c0_i32, %c0_i32_0, %arg1 : i32, i32, i32
  }
  func.func @transform_2(%arg0: i32, %arg1: i32) -> (i32, i32) {
    %c0_i32 = arith.constant 0 : i32
    %c0_i32_0 = arith.constant 0 : i32
    return %c0_i32, %arg1 : i32, i32
  }
  func.func @transform_3(%arg0: i32, %arg1: i32) -> (i32, i32) {
    %c0_i32 = arith.constant 0 : i32
    %c0_i32_0 = arith.constant 0 : i32
    return %c0_i32, %arg1 : i32, i32
  }
  func.func @transform_4(%arg0: i32, %arg1: i32) -> (i32, i32, i32) {
    %c0_i32 = arith.constant 0 : i32
    %c0_i32_0 = arith.constant 0 : i32
    return %arg0, %c0_i32, %arg1 : i32, i32, i32
  }
}

</mosaic_0001>

<llo_original>
// kernel: conv_feature_extractor.4
$region0: #{conv_feature_extractor.4}
  #allocation0 [shape = 'u32[]', space=smem, size = 0x4, offset = 0x4, fixed_abs, tag = 'smem constant byte address 0x4 - core index']
  #allocation1 [shape = 'u32[144,128]{1,0:T(1,128)}', space=vmem, size = 0x12000, scoped, tag = 'internal scratch']
  %s0 = inlined_call_operand.vmem [shape: bf16[2,2,6,128], index: 0, kind: input, shape index: {}]
  %s1 = inlined_call_operand.vmem [shape: bf16[5,128,128], index: 1, kind: input, shape index: {}]
  %s2 = inlined_call_operand.vmem [shape: f32[1,128], index: 2, kind: input, shape index: {}]
  %s3 = inlined_call_operand.vmem [shape: f32[1,128], index: 3, kind: input, shape index: {}]
  %s4 = inlined_call_operand.vmem [shape: bf16[2,4,128], index: 4, kind: output, shape index: {}]
  %s5 = sld [smem:[#allocation0]]
  $region90: #{conv_feature_extractor.4} parent=0
    _
  %s7 = ssub.s32 1, %s5
  %s8 = scalar_select 0, %s7, %s5
  $region1: #{conv_feature_extractor.4} parent=0
    #allocation2 [shape = 'u8[8192]{0}', space=vmem, size = 0x2000, scoped, tag = 'input window, operand 0']
    loop: start=0, step=1, limit=4
    $region2: #{conv_feature_extractor.4} parent=1 // loop_pre_header
      _
    $region3: #{conv_feature_extractor.4} parent=1 // loop_header
      %s10 = sphi 0, %s14
      %p11 = scmp.ge.s32.totalorder %s10, 4
      %s17 = sphi 0, %s29
      %s18 = sphi 0, %s25
      %s19 = sphi 0, %s17
      %s20 = sphi 0, %s18
      %s21 = sphi 0, %s19
      %s22 = sphi 0, %s20
      %s32 = sphi 0, %s34
      %s35 = sphi 0, %s32
      %s36 = sphi 0, %s35
      %s52 = sphi 0, %s36
      %s58 = sphi 0, %s60
      %s61 = sphi 0, %s58
      %s62 = sphi 0, %s61
      %s78 = sphi 0, %s62
      %s84 = sphi 0, %s86
      %s87 = sphi 0, %s84
      %s88 = sphi 0, %s87
      %s104 = sphi 0, %s88
      %s110 = sphi 0, %s112
      %s113 = sphi 0, %s110
      %s114 = sphi 0, %s113
      %s130 = sphi 0, %s114
      %s138 = sphi 0, %s140
      %s141 = sphi 0, %s138
      %s142 = sphi 0, %s141
      %s158 = sphi 0, %s142
    $region4: #{conv_feature_extractor.4} parent=1 // loop_header_branch
      %13 = sbr.rel (%p11) target = $region8
    $region5: #{conv_feature_extractor.4} parent=1 // loop_body
      %s15 = ssub.s32 %s10, 1
      %s16 = ssub.s32 %s10, 2
      %s23 = sadd.s32 1, %s18
      %p24 = scmp.ge.s32.totalorder %s23, 1
      %s25 = scalar_select %p24, 0, %s23
      %s26 = sadd.s32 1, %s17
      %s27 = scalar_select %p24, %s26, %s17
      %p28 = scmp.ge.s32.totalorder %s27, 2
      %s29 = scalar_select %p28, 0, %s27
      %s30 = ssub.s32 %s17, %s29
      %p31 = scmp.eq.s32.totalorder %s30, 0
      %s33 = sadd.s32 %s32, 1
      %s34 = scalar_select %p31, %s32, %s33
      %p37 = pneg %p31
      %p38 = scmp.eq.s32.totalorder %s10, 1
      %p39 = por %p37, %p38
      %p40 = scmp.ne.s32.totalorder %s32, %s35
      %p41 = scmp.eq.s32.totalorder %s10, 0
      %p42 = por %p40, %p41
      %p43 = scmp.ne.s32.totalorder %s32, %s35
      %p44 = scmp.eq.s32.totalorder %s15, 1
      %p45 = por %p43, %p44
      %p46 = scmp.ne.s32.totalorder %s35, %s36
      %p47 = scmp.eq.s32.totalorder %s15, 0
      %p48 = por %p46, %p47
      %p49 = scmp.ne.s32.totalorder %s35, %s36
      %p50 = scmp.eq.s32.totalorder %s16, 1
      %p51 = por %p49, %p50
      %p53 = scmp.ne.s32.totalorder %s36, %s52
      %p54 = scmp.eq.s32.totalorder %s16, 0
      %p55 = por %p53, %p54
      %s56 = ssub.s32 %s18, %s25
      %p57 = scmp.eq.s32.totalorder %s56, 0
      %s59 = sadd.s32 %s58, 1
      %s60 = scalar_select %p57, %s58, %s59
      %p63 = pneg %p57
      %p64 = scmp.eq.s32.totalorder %s10, 1
      %p65 = por %p63, %p64
      %p66 = scmp.ne.s32.totalorder %s58, %s61
      %p67 = scmp.eq.s32.totalorder %s10, 0
      %p68 = por %p66, %p67
      %p69 = scmp.ne.s32.totalorder %s58, %s61
      %p70 = scmp.eq.s32.totalorder %s15, 1
      %p71 = por %p69, %p70
      %p72 = scmp.ne.s32.totalorder %s61, %s62
      %p73 = scmp.eq.s32.totalorder %s15, 0
      %p74 = por %p72, %p73
      %p75 = scmp.ne.s32.totalorder %s61, %s62
      %p76 = scmp.eq.s32.totalorder %s16, 1
      %p77 = por %p75, %p76
      %p79 = scmp.ne.s32.totalorder %s62, %s78
      %p80 = scmp.eq.s32.totalorder %s16, 0
      %p81 = por %p79, %p80
      %s82 = ssub.s32 %s18, %s25
      %p83 = scmp.eq.s32.totalorder %s82, 0
      %s85 = sadd.s32 %s84, 1
      %s86 = scalar_select %p83, %s84, %s85
      %p89 = pneg %p83
      %p90 = scmp.eq.s32.totalorder %s10, 1
      %p91 = por %p89, %p90
      %p92 = scmp.ne.s32.totalorder %s84, %s87
      %p93 = scmp.eq.s32.totalorder %s10, 0
      %p94 = por %p92, %p93
      %p95 = scmp.ne.s32.totalorder %s84, %s87
      %p96 = scmp.eq.s32.totalorder %s15, 1
      %p97 = por %p95, %p96
      %p98 = scmp.ne.s32.totalorder %s87, %s88
      %p99 = scmp.eq.s32.totalorder %s15, 0
      %p100 = por %p98, %p99
      %p101 = scmp.ne.s32.totalorder %s87, %s88
      %p102 = scmp.eq.s32.totalorder %s16, 1
      %p103 = por %p101, %p102
      %p105 = scmp.ne.s32.totalorder %s88, %s104
      %p106 = scmp.eq.s32.totalorder %s16, 0
      %p107 = por %p105, %p106
      %s108 = ssub.s32 %s18, %s25
      %p109 = scmp.eq.s32.totalorder %s108, 0
      %s111 = sadd.s32 %s110, 1
      %s112 = scalar_select %p109, %s110, %s111
      %p115 = pneg %p109
      %p116 = scmp.eq.s32.totalorder %s10, 1
      %p117 = por %p115, %p116
      %p118 = scmp.ne.s32.totalorder %s110, %s113
      %p119 = scmp.eq.s32.totalorder %s10, 0
      %p120 = por %p118, %p119
      %p121 = scmp.ne.s32.totalorder %s110, %s113
      %p122 = scmp.eq.s32.totalorder %s15, 1
      %p123 = por %p121, %p122
      %p124 = scmp.ne.s32.totalorder %s113, %s114
      %p125 = scmp.eq.s32.totalorder %s15, 0
      %p126 = por %p124, %p125
      %p127 = scmp.ne.s32.totalorder %s113, %s114
      %p128 = scmp.eq.s32.totalorder %s16, 1
      %p129 = por %p127, %p128
      %p131 = scmp.ne.s32.totalorder %s114, %s130
      %p132 = scmp.eq.s32.totalorder %s16, 0
      %p133 = por %p131, %p132
      %s134 = ssub.s32 %s17, %s29
      %s135 = ssub.s32 %s18, %s25
      %s136 = sor.u32 %s134, %s135
      %p137 = scmp.eq.s32.totalorder %s136, 0
      %s139 = sadd.s32 %s138, 1
      %s140 = scalar_select %p137, %s138, %s139
      %p143 = pneg %p137
      %p144 = scmp.eq.s32.totalorder %s10, 1
      %p145 = por %p143, %p144
      %p146 = scmp.ne.s32.totalorder %s138, %s141
      %p147 = scmp.eq.s32.totalorder %s10, 0
      %p148 = por %p146, %p147
      %p149 = scmp.ne.s32.totalorder %s138, %s141
      %p150 = scmp.eq.s32.totalorder %s15, 1
      %p151 = por %p149, %p150
      %p152 = scmp.ne.s32.totalorder %s141, %s142
      %p153 = scmp.eq.s32.totalorder %s15, 0
      %p154 = por %p152, %p153
      %p155 = scmp.ne.s32.totalorder %s141, %s142
      %p156 = scmp.eq.s32.totalorder %s16, 1
      %p157 = por %p155, %p156
      %p159 = scmp.ne.s32.totalorder %s142, %s158
      %p160 = scmp.eq.s32.totalorder %s16, 0
      %p161 = por %p159, %p160
      %p162 = scmp.le.s32.totalorder 1, %s10
      %p163 = scmp.lt.s32.totalorder %s10, 3
      %p164 = pnand %p162, %p163
      %p165 = pneg %p164
      // Predicated region
      $region9: #{conv_feature_extractor.4} parent=5 // pred_check
        _
      $region10: #{conv_feature_extractor.4} parent=5 // pred_check_branch
        %167 = sbr.rel (%p164) target = $region12
      $region11: #{conv_feature_extractor.4} parent=5 // pred_region
        %s168 = ssub.s32 %s10, 1
        // Predicated region
        $region13: #{conv_feature_extractor.4} parent=11 // pred_check
          %p169 = pneg %p74
        $region14: #{conv_feature_extractor.4} parent=11 // pred_check_branch
          %171 = sbr.rel (%p169) target = $region16
        $region15: #{conv_feature_extractor.4} parent=11 // pred_region
          %p172 = scmp.lt.s32.totalorder %s20, 0
          %s173 = scalar_select %p172, %s20, 0
          %s174 = smul.addr %s173, 4
          %s175 = scalar_lea.vmem %s1, %s174
        $region16: #{conv_feature_extractor.4} parent=11 // pred_fallthru
          _
        // Predicated region
        $region17: #{conv_feature_extractor.4} parent=11 // pred_check
          %p176 = pneg %p100
        $region18: #{conv_feature_extractor.4} parent=11 // pred_check_branch
          %178 = sbr.rel (%p176) target = $region20
        $region19: #{conv_feature_extractor.4} parent=11 // pred_region
          %p179 = scmp.lt.s32.totalorder %s20, 0
          %s180 = scalar_select %p179, %s20, 0
          %s181 = scalar_lea.vmem %s2, %s180
        $region20: #{conv_feature_extractor.4} parent=11 // pred_fallthru
          _
        // Predicated region
        $region21: #{conv_feature_extractor.4} parent=11 // pred_check
          %p182 = pneg %p126
        $region22: #{conv_feature_extractor.4} parent=11 // pred_check_branch
          %184 = sbr.rel (%p182) target = $region24
        $region23: #{conv_feature_extractor.4} parent=11 // pred_region
          %p185 = scmp.lt.s32.totalorder %s20, 0
          %s186 = scalar_select %p185, %s20, 0
          %s187 = scalar_lea.vmem %s3, %s186
        $region24: #{conv_feature_extractor.4} parent=11 // pred_fallthru
          _
      $region12: #{conv_feature_extractor.4} parent=5 // pred_fallthru
        _
      %p188 = scmp.lt.s32.totalorder %s10, 2
      // Predicated region
      $region25: #{conv_feature_extractor.4} parent=5 // pred_check
        %p189 = pneg %p188
      $region26: #{conv_feature_extractor.4} parent=5 // pred_check_branch
        %191 = sbr.rel (%p189) target = $region28
      $region27: #{conv_feature_extractor.4} parent=5 // pred_region
        // Predicated region
        $region29: #{conv_feature_extractor.4} parent=27 // pred_check
          %p192 = pneg %p42
        $region30: #{conv_feature_extractor.4} parent=27 // pred_check_branch
          %194 = sbr.rel (%p192) target = $region32
        $region31: #{conv_feature_extractor.4} parent=27 // pred_region
          %s195 = sand.u32 %s32, 1
          %s196 = sand.u32 %s32, 1
          %s197 = smul.addr %s196, 8
          %s198 = scalar_lea.vmem [#allocation2], %s197
          %s199 = smul.addr %s17, 4
          %s200 = scalar_lea.vmem %s0, %s199
          // Predicated region
          $region33: #{conv_feature_extractor.4} parent=31 // pred_check
            _
          $region34: #{conv_feature_extractor.4} parent=31 // pred_check_branch
            %202 = sbr.rel (0) target = $region36
          $region35: #{conv_feature_extractor.4} parent=31 // pred_region
            // Predicated region
            $region37: #{conv_feature_extractor.4} parent=35 // pred_check
              _
            $region38: #{conv_feature_extractor.4} parent=35 // pred_check_branch
              %204 = sbr.rel target = $region40
            $region39: #{conv_feature_extractor.4} parent=35 // pred_region
              // Predicated region
              $region52: #{conv_feature_extractor.4} parent=39 // pred_check
                _
              $region53: #{conv_feature_extractor.4} parent=39 // pred_check_branch
                %221 = sbr.rel (0) target = $region55
              $region54: #{conv_feature_extractor.4} parent=39 // pred_region
                loop: start=0, step=1, limit=1
                $region56: #{conv_feature_extractor.4} parent=54 // loop_pre_header
                  _
                $region57: #{conv_feature_extractor.4} parent=54 // loop_header
                  %s223 = sphi 0, %s227
                  %p224 = scmp.ge.s32.totalorder %s223, 1
                  %s228 = sphi %s200, %s200
                  %s229 = sphi %s198, %s198
                $region58: #{conv_feature_extractor.4} parent=54 // loop_header_branch
                  %226 = sbr.rel (%p224) target = $region62
                $region59: #{conv_feature_extractor.4} parent=54 // loop_body
                  _
                $region60: #{conv_feature_extractor.4} parent=54 // loop_footer
                  %s227 = sadd.s32 1, %s223
                $region61: #{conv_feature_extractor.4} parent=54 // loop_footer_branch
                  %222 = sbr.rel target = $region57
                $region62: #{conv_feature_extractor.4} parent=54 // loop_exit
                  _
                loop: start=0, step=1, limit=1
                $region63: #{conv_feature_extractor.4} parent=54 // loop_pre_header
                  _
                $region64: #{conv_feature_extractor.4} parent=54 // loop_header
                  %s232 = sphi 0, %s236
                  %p233 = scmp.ge.s32.totalorder %s232, 1
                  %s237 = sphi %s200, %s200
                  %s238 = sphi %s198, %s198
                $region65: #{conv_feature_extractor.4} parent=54 // loop_header_branch
                  %235 = sbr.rel (%p233) target = $region69
                $region66: #{conv_feature_extractor.4} parent=54 // loop_body
                  %v239 = vld [vmem:[%s237] sm:$0xf]
                  %240 = vst [vmem:[%s238] sm:$0xf] %v239
                  %v241 = vld [vmem:[%s237 + $0x8] sm:$0xf]
                  %242 = vst [vmem:[%s238 + $0x4] sm:$0xf] %v241
                $region67: #{conv_feature_extractor.4} parent=54 // loop_footer
                  %s236 = sadd.s32 1, %s232
                $region68: #{conv_feature_extractor.4} parent=54 // loop_footer_branch
                  %231 = sbr.rel target = $region64
                $region69: #{conv_feature_extractor.4} parent=54 // loop_exit
                  _
              $region55: #{conv_feature_extractor.4} parent=39 // pred_fallthru
                _
            $region40: #{conv_feature_extractor.4} parent=35 // pred_fallthru
              _
            // Predicated region
            $region41: #{conv_feature_extractor.4} parent=35 // pred_check
              _
            $region42: #{conv_feature_extractor.4} parent=35 // pred_check_branch
              %206 = sbr.rel (0) target = $region44
            $region43: #{conv_feature_extractor.4} parent=35 // pred_region
              loop: start=0, step=1, limit=1
              $region45: #{conv_feature_extractor.4} parent=43 // loop_pre_header
                _
              $region46: #{conv_feature_extractor.4} parent=43 // loop_header
                %s209 = sphi 0, %s213
                %p210 = scmp.ge.s32.totalorder %s209, 1
                %s214 = sphi %s200, %s200
                %s215 = sphi %s198, %s198
              $region47: #{conv_feature_extractor.4} parent=43 // loop_header_branch
                %212 = sbr.rel (%p210) target = $region51
              $region48: #{conv_feature_extractor.4} parent=43 // loop_body
                %v216 = vld [vmem:[%s214] sm:$0xf]
                %217 = vst [vmem:[%s215] sm:$0xf] %v216
                %v218 = vld [vmem:[%s214 + $0x8] sm:$0xf]
                %219 = vst [vmem:[%s215 + $0x4] sm:$0xf] %v218
              $region49: #{conv_feature_extractor.4} parent=43 // loop_footer
                %s213 = sadd.s32 1, %s209
              $region50: #{conv_feature_extractor.4} parent=43 // loop_footer_branch
                %208 = sbr.rel target = $region46
              $region51: #{conv_feature_extractor.4} parent=43 // loop_exit
                _
            $region44: #{conv_feature_extractor.4} parent=35 // pred_fallthru
              _
          $region36: #{conv_feature_extractor.4} parent=31 // pred_fallthru
            _
          %243 = vnop
        $region32: #{conv_feature_extractor.4} parent=27 // pred_fallthru
          _
      $region28: #{conv_feature_extractor.4} parent=5 // pred_fallthru
        _
      %p244 = scmp.le.s32.totalorder 1, %s10
      %p245 = scmp.lt.s32.totalorder %s10, 3
      %p246 = pnand %p244, %p245
      %p247 = pneg %p246
      // Predicated region
      $region70: #{conv_feature_extractor.4} parent=5 // pred_check
        _
      $region71: #{conv_feature_extractor.4} parent=5 // pred_check_branch
        %249 = sbr.rel (%p246) target = $region73
      $region72: #{conv_feature_extractor.4} parent=5 // pred_region
        %s250 = ssub.s32 %s10, 1
        %s251 = sand.u32 %s35, 1
        %s252 = sand.u32 %s35, 1
        %s253 = smul.addr %s252, 8
        %s254 = scalar_lea.vmem [#allocation2], %s253
        // Predicated region
        $region74: #{conv_feature_extractor.4} parent=72 // pred_check
          %p255 = pneg %p48
        $region75: #{conv_feature_extractor.4} parent=72 // pred_check_branch
          %257 = sbr.rel (%p255) target = $region77
        $region76: #{conv_feature_extractor.4} parent=72 // pred_region
          _
        $region77: #{conv_feature_extractor.4} parent=72 // pred_fallthru
          _
        %s258 = sand.u32 %s35, 1
        %s259 = sand.u32 %s35, 1
        %s260 = smul.addr %s259, 8
        %s261 = scalar_lea.vmem [#allocation2], %s260
        %p262 = pneg %p48
        %p263 = pneg %p45
        %p264 = scmp.lt.s32.totalorder %s20, 0
        %s265 = scalar_select %p264, %s20, 0
        %s266 = smul.addr %s265, 4
        %s267 = scalar_lea.vmem %s1, %s266
        %p268 = pneg %p74
        %p269 = pneg %p71
        %p270 = scmp.lt.s32.totalorder %s20, 0
        %s271 = scalar_select %p270, %s20, 0
        %s272 = scalar_lea.vmem %s2, %s271
        %p273 = pneg %p100
        %p274 = pneg %p97
        %p275 = scmp.lt.s32.totalorder %s20, 0
        %s276 = scalar_select %p275, %s20, 0
        %s277 = scalar_lea.vmem %s3, %s276
        %p278 = pneg %p126
        %p279 = pneg %p123
        %p280 = pneg %p154
        %p281 = pneg %p151
        %p282 = scmp.lt.s32.totalorder %s19, 1
        %s283 = scalar_select %p282, %s19, 1
        %p284 = scmp.lt.s32.totalorder %s20, 0
        %s285 = scalar_select %p284, %s20, 0
        %s286 = sadd.s32 %s285, %s283
        %s287 = smul.addr %s286, 2
        %s288 = scalar_lea.vmem %s4, %s287
        %p289 = scmp.lt.s32.totalorder %s20, 0
        %s290 = scalar_select %p289, %s20, 0
        %s291 = smul.addr %s290, 4
        %s292 = scalar_lea.vmem %s1, %s291
        %p293 = scmp.lt.s32.totalorder %s20, 0
        %s294 = scalar_select %p293, %s20, 0
        %s295 = scalar_lea.vmem %s2, %s294
        %p296 = scmp.lt.s32.totalorder %s20, 0
        %s297 = scalar_select %p296, %s20, 0
        %s298 = scalar_lea.vmem %s3, %s297
        %p299 = scmp.lt.s32.totalorder %s19, 1
        %s300 = scalar_select %p299, %s19, 1
        %p301 = scmp.lt.s32.totalorder %s20, 0
        %s302 = scalar_select %p301, %s20, 0
        %s303 = sadd.s32 %s302, %s300
        %s304 = smul.addr %s303, 2
        %s305 = scalar_lea.vmem %s4, %s304
        %v307 = vld [vmem:[%s254] sm:$0x3]
        %v308 = vld [vmem:[%s292] sm:$0xf]
        %v309 = vld [vmem:[%s292 + $0x4] sm:$0xf]
        %v310 = vld [vmem:[%s292 + $0x8] sm:$0xf]
        %v311 = vld [vmem:[%s292 + $0xc] sm:$0xf]
        %v312 = vld [vmem:[%s292 + $0x10] sm:$0xf]
        %v313 = vld [vmem:[%s292 + $0x14] sm:$0xf]
        %v314 = vld [vmem:[%s292 + $0x18] sm:$0xf]
        %v315 = vld [vmem:[%s292 + $0x1c] sm:$0xf]
        %v316 = vld [vmem:[%s292 + $0x20] sm:$0xf]
        %v317 = vld [vmem:[%s292 + $0x24] sm:$0xf]
        %v318 = vld [vmem:[%s292 + $0x28] sm:$0xf]
        %v319 = vld [vmem:[%s292 + $0x2c] sm:$0xf]
        %v320 = vld [vmem:[%s292 + $0x30] sm:$0xf]
        %v321 = vld [vmem:[%s292 + $0x34] sm:$0xf]
        %v322 = vld [vmem:[%s292 + $0x38] sm:$0xf]
        %v323 = vld [vmem:[%s292 + $0x3c] sm:$0xf]
        %s324 = scalar_lea.vmem %s254, 4 [#allocation2]
        %v325 = vld [vmem:[%s324] sm:$0x3]
        %s326 = scalar_lea.vmem %s292, 64
        %v327 = vld [vmem:[%s326] sm:$0xf]
        %v328 = vld [vmem:[%s326 + $0x4] sm:$0xf]
        %v329 = vld [vmem:[%s326 + $0x8] sm:$0xf]
        %v330 = vld [vmem:[%s326 + $0xc] sm:$0xf]
        %v331 = vld [vmem:[%s326 + $0x10] sm:$0xf]
        %v332 = vld [vmem:[%s326 + $0x14] sm:$0xf]
        %v333 = vld [vmem:[%s326 + $0x18] sm:$0xf]
        %v334 = vld [vmem:[%s326 + $0x1c] sm:$0xf]
        %v335 = vld [vmem:[%s326 + $0x20] sm:$0xf]
        %v336 = vld [vmem:[%s326 + $0x24] sm:$0xf]
        %v337 = vld [vmem:[%s326 + $0x28] sm:$0xf]
        %v338 = vld [vmem:[%s326 + $0x2c] sm:$0xf]
        %v339 = vld [vmem:[%s326 + $0x30] sm:$0xf]
        %v340 = vld [vmem:[%s326 + $0x34] sm:$0xf]
        %v341 = vld [vmem:[%s326 + $0x38] sm:$0xf]
        %v342 = vld [vmem:[%s326 + $0x3c] sm:$0xf]
        %v359 = vunpack.c.l.b16 %v327
        %v360 = vunpack.c.l.b16 %v328
        %v361 = vunpack.c.l.b16 %v329
        %v362 = vunpack.c.l.b16 %v330
        %v363 = vunpack.c.l.b16 %v331
        %v364 = vunpack.c.l.b16 %v332
        %v365 = vunpack.c.l.b16 %v333
        %v366 = vunpack.c.l.b16 %v334
        %v367 = vunpack.c.l.b16 %v335
        %v368 = vunpack.c.l.b16 %v336
        %v369 = vunpack.c.l.b16 %v337
        %v370 = vunpack.c.l.b16 %v338
        %v371 = vunpack.c.l.b16 %v339
        %v372 = vunpack.c.l.b16 %v340
        %v373 = vunpack.c.l.b16 %v341
        %v374 = vunpack.c.l.b16 %v342
        %v375 = vpack.c.b16 %v360, %v359
        %v376 = vpack.c.b16 %v362, %v361
        %v377 = vpack.c.b16 %v364, %v363
        %v378 = vpack.c.b16 %v366, %v365
        %v379 = vpack.c.b16 %v368, %v367
        %v380 = vpack.c.b16 %v370, %v369
        %v381 = vpack.c.b16 %v372, %v371
        %v382 = vpack.c.b16 %v374, %v373
        %391 = vmatprep.subr.bf16.mxu0 0
        %392 = vmatpush1.bf16.msra.mxu0 %v375
        %393 = vmatprep.subr.bf16.mxu0 0
        %394 = vmatpush1.bf16.msra.mxu0 %v376
        %395 = vmatprep.subr.bf16.mxu0 0
        %396 = vmatpush1.bf16.msra.mxu0 %v377
        %397 = vmatprep.subr.bf16.mxu0 0
        %398 = vmatpush1.bf16.msra.mxu0 %v378
        %399 = vmatprep.subr.bf16.mxu0 0
        %400 = vmatpush1.bf16.msra.mxu0 %v379
        %401 = vmatprep.subr.bf16.mxu0 0
        %402 = vmatpush1.bf16.msra.mxu0 %v380
        %403 = vmatprep.subr.bf16.mxu0 0
        %404 = vmatpush1.bf16.msra.mxu0 %v381
        %405 = vmatprep.subr.bf16.mxu0 0
        %406 = vmatpush1.bf16.msra.mxu0 %v382
        %407 = vmatprep.subr.bf16.mxu0 0
        %408 = vmatpush1.bf16.msra.mxu0 0
        %409 = vmatprep.subr.bf16.mxu0 0
        %410 = vmatpush1.bf16.msra.mxu0 0
        %411 = vmatprep.subr.bf16.mxu0 0
        %412 = vmatpush1.bf16.msra.mxu0 0
        %413 = vmatprep.subr.bf16.mxu0 0
        %414 = vmatpush1.bf16.msra.mxu0 0
        %415 = vmatprep.subr.bf16.mxu0 0
        %416 = vmatpush1.bf16.msra.mxu0 0
        %417 = vmatprep.subr.bf16.mxu0 0
        %418 = vmatpush1.bf16.msra.mxu0 0
        %419 = vmatprep.subr.bf16.mxu0 0
        %420 = vmatpush1.bf16.msra.mxu0 0
        %421 = vmatprep.subr.bf16.mxu0 0
        %422 = vmatpush1.bf16.msra.mxu0 0
        %423 = vmatprep.mubr.bf16.mxu0 0
        %424 = vmatmul.mubr.bf16.gmra.mrb[0].mxu0 %v325
        %v425 = vpop.f32.mrb[0].mxu0
        %v426 = vadd.f32 0.0, %v425
        %v427 = vpop.f32.mrb[0].mxu0
        %v428 = vpop.f32.mrb[0].mxu0
        %v429 = vpop.f32.mrb[0].mxu0
        %430 = vdwg.mxu0
        %v447 = vunpack.c.l.b16 %v308
        %v448 = vunpack.c.l.b16 %v309
        %v449 = vunpack.c.l.b16 %v310
        %v450 = vunpack.c.l.b16 %v311
        %v451 = vunpack.c.l.b16 %v312
        %v452 = vunpack.c.l.b16 %v313
        %v453 = vunpack.c.l.b16 %v314
        %v454 = vunpack.c.l.b16 %v315
        %v455 = vunpack.c.l.b16 %v316
        %v456 = vunpack.c.l.b16 %v317
        %v457 = vunpack.c.l.b16 %v318
        %v458 = vunpack.c.l.b16 %v319
        %v459 = vunpack.c.l.b16 %v320
        %v460 = vunpack.c.l.b16 %v321
        %v461 = vunpack.c.l.b16 %v322
        %v462 = vunpack.c.l.b16 %v323
        %v463 = vpack.c.b16 %v448, %v447
        %v464 = vpack.c.b16 %v450, %v449
        %v465 = vpack.c.b16 %v452, %v451
        %v466 = vpack.c.b16 %v454, %v453
        %v467 = vpack.c.b16 %v456, %v455
        %v468 = vpack.c.b16 %v458, %v457
        %v469 = vpack.c.b16 %v460, %v459
        %v470 = vpack.c.b16 %v462, %v461
        %479 = vmatprep.subr.bf16.mxu0 0
        %480 = vmatpush1.bf16.msra.mxu0 %v463
        %481 = vmatprep.subr.bf16.mxu0 0
        %482 = vmatpush1.bf16.msra.mxu0 %v464
        %483 = vmatprep.subr.bf16.mxu0 0
        %484 = vmatpush1.bf16.msra.mxu0 %v465
        %485 = vmatprep.subr.bf16.mxu0 0
        %486 = vmatpush1.bf16.msra.mxu0 %v466
        %487 = vmatprep.subr.bf16.mxu0 0
        %488 = vmatpush1.bf16.msra.mxu0 %v467
        %489 = vmatprep.subr.bf16.mxu0 0
        %490 = vmatpush1.bf16.msra.mxu0 %v468
        %491 = vmatprep.subr.bf16.mxu0 0
        %492 = vmatpush1.bf16.msra.mxu0 %v469
        %493 = vmatprep.subr.bf16.mxu0 0
        %494 = vmatpush1.bf16.msra.mxu0 %v470
        %495 = vmatprep.subr.bf16.mxu0 0
        %496 = vmatpush1.bf16.msra.mxu0 0
        %497 = vmatprep.subr.bf16.mxu0 0
        %498 = vmatpush1.bf16.msra.mxu0 0
        %499 = vmatprep.subr.bf16.mxu0 0
        %500 = vmatpush1.bf16.msra.mxu0 0
        %501 = vmatprep.subr.bf16.mxu0 0
        %502 = vmatpush1.bf16.msra.mxu0 0
        %503 = vmatprep.subr.bf16.mxu0 0
        %504 = vmatpush1.bf16.msra.mxu0 0
        %505 = vmatprep.subr.bf16.mxu0 0
        %506 = vmatpush1.bf16.msra.mxu0 0
        %507 = vmatprep.subr.bf16.mxu0 0
        %508 = vmatpush1.bf16.msra.mxu0 0
        %509 = vmatprep.subr.bf16.mxu0 0
        %510 = vmatpush1.bf16.msra.mxu0 0
        %511 = vmatprep.mubr.bf16.mxu0 0
        %512 = vmatmul.mubr.bf16.gmra.mrb[0].mxu0 %v307
        %v513 = vpop.f32.mrb[0].mxu0
        %v514 = vadd.f32 %v426, %v513
        %v515 = vpop.f32.mrb[0].mxu0
        %v516 = vpop.f32.mrb[0].mxu0
        %v517 = vpop.f32.mrb[0].mxu0
        %518 = vdwg.mxu0
        %v519 = vld [vmem:[%s254] sm:$0x7]
        %s520 = scalar_lea.vmem %s292, 128
        %v521 = vld [vmem:[%s520] sm:$0xf]
        %v522 = vld [vmem:[%s520 + $0x4] sm:$0xf]
        %v523 = vld [vmem:[%s520 + $0x8] sm:$0xf]
        %v524 = vld [vmem:[%s520 + $0xc] sm:$0xf]
        %v525 = vld [vmem:[%s520 + $0x10] sm:$0xf]
        %v526 = vld [vmem:[%s520 + $0x14] sm:$0xf]
        %v527 = vld [vmem:[%s520 + $0x18] sm:$0xf]
        %v528 = vld [vmem:[%s520 + $0x1c] sm:$0xf]
        %v529 = vld [vmem:[%s520 + $0x20] sm:$0xf]
        %v530 = vld [vmem:[%s520 + $0x24] sm:$0xf]
        %v531 = vld [vmem:[%s520 + $0x28] sm:$0xf]
        %v532 = vld [vmem:[%s520 + $0x2c] sm:$0xf]
        %v533 = vld [vmem:[%s520 + $0x30] sm:$0xf]
        %v534 = vld [vmem:[%s520 + $0x34] sm:$0xf]
        %v535 = vld [vmem:[%s520 + $0x38] sm:$0xf]
        %v536 = vld [vmem:[%s520 + $0x3c] sm:$0xf]
        %v538 = vunpack.c.l.b16 %v519
        %v539 = vpack.c.b16 %v538, %v538
        %v541 = vshrl.u32 %v539, 16
        %v543 = vshll.u32 %v539, 16
        %v545 = vrot.slane %v543, 1
        %v546 = vor.u32 %v541, %v545
        %v564 = vunpack.c.l.b16 %v521
        %v565 = vunpack.c.l.b16 %v522
        %v566 = vunpack.c.l.b16 %v523
        %v567 = vunpack.c.l.b16 %v524
        %v568 = vunpack.c.l.b16 %v525
        %v569 = vunpack.c.l.b16 %v526
        %v570 = vunpack.c.l.b16 %v527
        %v571 = vunpack.c.l.b16 %v528
        %v572 = vunpack.c.l.b16 %v529
        %v573 = vunpack.c.l.b16 %v530
        %v574 = vunpack.c.l.b16 %v531
        %v575 = vunpack.c.l.b16 %v532
        %v576 = vunpack.c.l.b16 %v533
        %v577 = vunpack.c.l.b16 %v534
        %v578 = vunpack.c.l.b16 %v535
        %v579 = vunpack.c.l.b16 %v536
        %v580 = vpack.c.b16 %v565, %v564
        %v581 = vpack.c.b16 %v567, %v566
        %v582 = vpack.c.b16 %v569, %v568
        %v583 = vpack.c.b16 %v571, %v570
        %v584 = vpack.c.b16 %v573, %v572
        %v585 = vpack.c.b16 %v575, %v574
        %v586 = vpack.c.b16 %v577, %v576
        %v587 = vpack.c.b16 %v579, %v578
        %596 = vmatprep.subr.bf16.mxu0 0
        %597 = vmatpush1.bf16.msra.mxu0 %v580
        %598 = vmatprep.subr.bf16.mxu0 0
        %599 = vmatpush1.bf16.msra.mxu0 %v581
        %600 = vmatprep.subr.bf16.mxu0 0
        %601 = vmatpush1.bf16.msra.mxu0 %v582
        %602 = vmatprep.subr.bf16.mxu0 0
        %603 = vmatpush1.bf16.msra.mxu0 %v583
        %604 = vmatprep.subr.bf16.mxu0 0
        %605 = vmatpush1.bf16.msra.mxu0 %v584
        %606 = vmatprep.subr.bf16.mxu0 0
        %607 = vmatpush1.bf16.msra.mxu0 %v585
        %608 = vmatprep.subr.bf16.mxu0 0
        %609 = vmatpush1.bf16.msra.mxu0 %v586
        %610 = vmatprep.subr.bf16.mxu0 0
        %611 = vmatpush1.bf16.msra.mxu0 %v587
        %612 = vmatprep.subr.bf16.mxu0 0
        %613 = vmatpush1.bf16.msra.mxu0 0
        %614 = vmatprep.subr.bf16.mxu0 0
        %615 = vmatpush1.bf16.msra.mxu0 0
        %616 = vmatprep.subr.bf16.mxu0 0
        %617 = vmatpush1.bf16.msra.mxu0 0
        %618 = vmatprep.subr.bf16.mxu0 0
        %619 = vmatpush1.bf16.msra.mxu0 0
        %620 = vmatprep.subr.bf16.mxu0 0
        %621 = vmatpush1.bf16.msra.mxu0 0
        %622 = vmatprep.subr.bf16.mxu0 0
        %623 = vmatpush1.bf16.msra.mxu0 0
        %624 = vmatprep.subr.bf16.mxu0 0
        %625 = vmatpush1.bf16.msra.mxu0 0
        %626 = vmatprep.subr.bf16.mxu0 0
        %627 = vmatpush1.bf16.msra.mxu0 0
        %628 = vmatprep.mubr.bf16.mxu0 0
        %629 = vmatmul.mubr.bf16.gmra.mrb[0].mxu0 %v546
        %v630 = vpop.f32.mrb[0].mxu0
        %v631 = vadd.f32 0.0, %v630
        %v632 = vpop.f32.mrb[0].mxu0
        %v633 = vpop.f32.mrb[0].mxu0
        %v634 = vpop.f32.mrb[0].mxu0
        %635 = vdwg.mxu0
        %v636 = vadd.f32 %v514, %v631
        %v637 = vld [vmem:[%s324] sm:$0x7]
        %s638 = scalar_lea.vmem %s292, 192
        %v639 = vld [vmem:[%s638] sm:$0xf]
        %v640 = vld [vmem:[%s638 + $0x4] sm:$0xf]
        %v641 = vld [vmem:[%s638 + $0x8] sm:$0xf]
        %v642 = vld [vmem:[%s638 + $0xc] sm:$0xf]
        %v643 = vld [vmem:[%s638 + $0x10] sm:$0xf]
        %v644 = vld [vmem:[%s638 + $0x14] sm:$0xf]
        %v645 = vld [vmem:[%s638 + $0x18] sm:$0xf]
        %v646 = vld [vmem:[%s638 + $0x1c] sm:$0xf]
        %v647 = vld [vmem:[%s638 + $0x20] sm:$0xf]
        %v648 = vld [vmem:[%s638 + $0x24] sm:$0xf]
        %v649 = vld [vmem:[%s638 + $0x28] sm:$0xf]
        %v650 = vld [vmem:[%s638 + $0x2c] sm:$0xf]
        %v651 = vld [vmem:[%s638 + $0x30] sm:$0xf]
        %v652 = vld [vmem:[%s638 + $0x34] sm:$0xf]
        %v653 = vld [vmem:[%s638 + $0x38] sm:$0xf]
        %v654 = vld [vmem:[%s638 + $0x3c] sm:$0xf]
        %v656 = vunpack.c.l.b16 %v637
        %v657 = vpack.c.b16 %v656, %v656
        %v659 = vshrl.u32 %v657, 16
        %v661 = vshll.u32 %v657, 16
        %v663 = vrot.slane %v661, 1
        %v664 = vor.u32 %v659, %v663
        %v682 = vunpack.c.l.b16 %v639
        %v683 = vunpack.c.l.b16 %v640
        %v684 = vunpack.c.l.b16 %v641
        %v685 = vunpack.c.l.b16 %v642
        %v686 = vunpack.c.l.b16 %v643
        %v687 = vunpack.c.l.b16 %v644
        %v688 = vunpack.c.l.b16 %v645
        %v689 = vunpack.c.l.b16 %v646
        %v690 = vunpack.c.l.b16 %v647
        %v691 = vunpack.c.l.b16 %v648
        %v692 = vunpack.c.l.b16 %v649
        %v693 = vunpack.c.l.b16 %v650
        %v694 = vunpack.c.l.b16 %v651
        %v695 = vunpack.c.l.b16 %v652
        %v696 = vunpack.c.l.b16 %v653
        %v697 = vunpack.c.l.b16 %v654
        %v698 = vpack.c.b16 %v683, %v682
        %v699 = vpack.c.b16 %v685, %v684
        %v700 = vpack.c.b16 %v687, %v686
        %v701 = vpack.c.b16 %v689, %v688
        %v702 = vpack.c.b16 %v691, %v690
        %v703 = vpack.c.b16 %v693, %v692
        %v704 = vpack.c.b16 %v695, %v694
        %v705 = vpack.c.b16 %v697, %v696
        %714 = vmatprep.subr.bf16.mxu0 0
        %715 = vmatpush1.bf16.msra.mxu0 %v698
        %716 = vmatprep.subr.bf16.mxu0 0
        %717 = vmatpush1.bf16.msra.mxu0 %v699
        %718 = vmatprep.subr.bf16.mxu0 0
        %719 = vmatpush1.bf16.msra.mxu0 %v700
        %720 = vmatprep.subr.bf16.mxu0 0
        %721 = vmatpush1.bf16.msra.mxu0 %v701
        %722 = vmatprep.subr.bf16.mxu0 0
        %723 = vmatpush1.bf16.msra.mxu0 %v702
        %724 = vmatprep.subr.bf16.mxu0 0
        %725 = vmatpush1.bf16.msra.mxu0 %v703
        %726 = vmatprep.subr.bf16.mxu0 0
        %727 = vmatpush1.bf16.msra.mxu0 %v704
        %728 = vmatprep.subr.bf16.mxu0 0
        %729 = vmatpush1.bf16.msra.mxu0 %v705
        %730 = vmatprep.subr.bf16.mxu0 0
        %731 = vmatpush1.bf16.msra.mxu0 0
        %732 = vmatprep.subr.bf16.mxu0 0
        %733 = vmatpush1.bf16.msra.mxu0 0
        %734 = vmatprep.subr.bf16.mxu0 0
        %735 = vmatpush1.bf16.msra.mxu0 0
        %736 = vmatprep.subr.bf16.mxu0 0
        %737 = vmatpush1.bf16.msra.mxu0 0
        %738 = vmatprep.subr.bf16.mxu0 0
        %739 = vmatpush1.bf16.msra.mxu0 0
        %740 = vmatprep.subr.bf16.mxu0 0
        %741 = vmatpush1.bf16.msra.mxu0 0
        %742 = vmatprep.subr.bf16.mxu0 0
        %743 = vmatpush1.bf16.msra.mxu0 0
        %744 = vmatprep.subr.bf16.mxu0 0
        %745 = vmatpush1.bf16.msra.mxu0 0
        %746 = vmatprep.mubr.bf16.mxu0 0
        %747 = vmatmul.mubr.bf16.gmra.mrb[0].mxu0 %v664
        %v748 = vpop.f32.mrb[0].mxu0
        %v749 = vadd.f32 0.0, %v748
        %v750 = vpop.f32.mrb[0].mxu0
        %v751 = vpop.f32.mrb[0].mxu0
        %v752 = vpop.f32.mrb[0].mxu0
        %753 = vdwg.mxu0
        %v754 = vadd.f32 %v636, %v749
        %v755 = vld [vmem:[%s254] sm:$0x6]
        %s756 = scalar_lea.vmem %s292, 256
        %v757 = vld [vmem:[%s756] sm:$0xf]
        %v758 = vld [vmem:[%s756 + $0x4] sm:$0xf]
        %v759 = vld [vmem:[%s756 + $0x8] sm:$0xf]
        %v760 = vld [vmem:[%s756 + $0xc] sm:$0xf]
        %v761 = vld [vmem:[%s756 + $0x10] sm:$0xf]
        %v762 = vld [vmem:[%s756 + $0x14] sm:$0xf]
        %v763 = vld [vmem:[%s756 + $0x18] sm:$0xf]
        %v764 = vld [vmem:[%s756 + $0x1c] sm:$0xf]
        %v765 = vld [vmem:[%s756 + $0x20] sm:$0xf]
        %v766 = vld [vmem:[%s756 + $0x24] sm:$0xf]
        %v767 = vld [vmem:[%s756 + $0x28] sm:$0xf]
        %v768 = vld [vmem:[%s756 + $0x2c] sm:$0xf]
        %v769 = vld [vmem:[%s756 + $0x30] sm:$0xf]
        %v770 = vld [vmem:[%s756 + $0x34] sm:$0xf]
        %v771 = vld [vmem:[%s756 + $0x38] sm:$0xf]
        %v772 = vld [vmem:[%s756 + $0x3c] sm:$0xf]
        %v774 = vunpack.c.l.b16 %v755
        %v775 = vpack.c.b16 %v774, %v774
        %v776 = vrot.slane %v775, 1
        %v794 = vunpack.c.l.b16 %v757
        %v795 = vunpack.c.l.b16 %v758
        %v796 = vunpack.c.l.b16 %v759
        %v797 = vunpack.c.l.b16 %v760
        %v798 = vunpack.c.l.b16 %v761
        %v799 = vunpack.c.l.b16 %v762
        %v800 = vunpack.c.l.b16 %v763
        %v801 = vunpack.c.l.b16 %v764
        %v802 = vunpack.c.l.b16 %v765
        %v803 = vunpack.c.l.b16 %v766
        %v804 = vunpack.c.l.b16 %v767
        %v805 = vunpack.c.l.b16 %v768
        %v806 = vunpack.c.l.b16 %v769
        %v807 = vunpack.c.l.b16 %v770
        %v808 = vunpack.c.l.b16 %v771
        %v809 = vunpack.c.l.b16 %v772
        %v810 = vpack.c.b16 %v795, %v794
        %v811 = vpack.c.b16 %v797, %v796
        %v812 = vpack.c.b16 %v799, %v798
        %v813 = vpack.c.b16 %v801, %v800
        %v814 = vpack.c.b16 %v803, %v802
        %v815 = vpack.c.b16 %v805, %v804
        %v816 = vpack.c.b16 %v807, %v806
        %v817 = vpack.c.b16 %v809, %v808
        %826 = vmatprep.subr.bf16.mxu0 0
        %827 = vmatpush1.bf16.msra.mxu0 %v810
        %828 = vmatprep.subr.bf16.mxu0 0
        %829 = vmatpush1.bf16.msra.mxu0 %v811
        %830 = vmatprep.subr.bf16.mxu0 0
        %831 = vmatpush1.bf16.msra.mxu0 %v812
        %832 = vmatprep.subr.bf16.mxu0 0
        %833 = vmatpush1.bf16.msra.mxu0 %v813
        %834 = vmatprep.subr.bf16.mxu0 0
        %835 = vmatpush1.bf16.msra.mxu0 %v814
        %836 = vmatprep.subr.bf16.mxu0 0
        %837 = vmatpush1.bf16.msra.mxu0 %v815
        %838 = vmatprep.subr.bf16.mxu0 0
        %839 = vmatpush1.bf16.msra.mxu0 %v816
        %840 = vmatprep.subr.bf16.mxu0 0
        %841 = vmatpush1.bf16.msra.mxu0 %v817
        %842 = vmatprep.subr.bf16.mxu0 0
        %843 = vmatpush1.bf16.msra.mxu0 0
        %844 = vmatprep.subr.bf16.mxu0 0
        %845 = vmatpush1.bf16.msra.mxu0 0
        %846 = vmatprep.subr.bf16.mxu0 0
        %847 = vmatpush1.bf16.msra.mxu0 0
        %848 = vmatprep.subr.bf16.mxu0 0
        %849 = vmatpush1.bf16.msra.mxu0 0
        %850 = vmatprep.subr.bf16.mxu0 0
        %851 = vmatpush1.bf16.msra.mxu0 0
        %852 = vmatprep.subr.bf16.mxu0 0
        %853 = vmatpush1.bf16.msra.mxu0 0
        %854 = vmatprep.subr.bf16.mxu0 0
        %855 = vmatpush1.bf16.msra.mxu0 0
        %856 = vmatprep.subr.bf16.mxu0 0
        %857 = vmatpush1.bf16.msra.mxu0 0
        %858 = vmatprep.mubr.bf16.mxu0 0
        %859 = vmatmul.mubr.bf16.gmra.mrb[0].mxu0 %v776
        %v860 = vpop.f32.mrb[0].mxu0
        %v861 = vadd.f32 0.0, %v860
        %v862 = vpop.f32.mrb[0].mxu0
        %v863 = vpop.f32.mrb[0].mxu0
        %v864 = vpop.f32.mrb[0].mxu0
        %865 = vdwg.mxu0
        %v866 = vadd.f32 %v754, %v861
        %v867 = vld [vmem:[%s295] sm:$0x1]
        %v869 = vlaneseq
        %v870 = vshrl.u32 %v869, 7
        %v871 = vsub.s32 0, %v870
        %v872 = vrot.slane %v867, %v871
        %v874 = vmul.f32 %v866, %v872
        %v875 = vld [vmem:[%s298] sm:$0x1]
        %v877 = vlaneseq
        %v878 = vshrl.u32 %v877, 7
        %v879 = vsub.s32 0, %v878
        %v880 = vrot.slane %v875, %v879
        %v882 = vadd.f32 %v874, %v880
        %v883 = vmax.f32 %v882, 0.0
        %v884 = vpack.c.bf16 %v883, %v883
        %885 = vst [vmem:[%s305] sm:$0x3] %v884
        %p886 = scmp.lt.s32.totalorder %s19, 1
        %s887 = scalar_select %p886, %s19, 1
        %p888 = scmp.lt.s32.totalorder %s20, 0
        %s889 = scalar_select %p888, %s20, 0
        %s890 = sadd.s32 %s889, %s887
        %s891 = smul.addr %s890, 2
        %s892 = scalar_lea.vmem %s4, %s891
        // Predicated region
        $region78: #{conv_feature_extractor.4} parent=72 // pred_check
          %p893 = pneg %p151
        $region79: #{conv_feature_extractor.4} parent=72 // pred_check_branch
          %895 = sbr.rel (%p893) target = $region81
        $region80: #{conv_feature_extractor.4} parent=72 // pred_region
          _
        $region81: #{conv_feature_extractor.4} parent=72 // pred_fallthru
          _
      $region73: #{conv_feature_extractor.4} parent=5 // pred_fallthru
        _
      %p896 = scmp.le.s32.totalorder 2, %s10
      // Predicated region
      $region82: #{conv_feature_extractor.4} parent=5 // pred_check
        %p897 = pneg %p896
      $region83: #{conv_feature_extractor.4} parent=5 // pred_check_branch
        %899 = sbr.rel (%p897) target = $region85
      $region84: #{conv_feature_extractor.4} parent=5 // pred_region
        %s900 = ssub.s32 %s10, 2
        // Predicated region
        $region86: #{conv_feature_extractor.4} parent=84 // pred_check
          %p901 = pneg %p157
        $region87: #{conv_feature_extractor.4} parent=84 // pred_check_branch
          %903 = sbr.rel (%p901) target = $region89
        $region88: #{conv_feature_extractor.4} parent=84 // pred_region
          %p904 = scmp.lt.s32.totalorder %s21, 1
          %s905 = scalar_select %p904, %s21, 1
          %p906 = scmp.lt.s32.totalorder %s22, 0
          %s907 = scalar_select %p906, %s22, 0
          %s908 = sadd.s32 %s907, %s905
          %s909 = smul.addr %s908, 2
          %s910 = scalar_lea.vmem %s4, %s909
        $region89: #{conv_feature_extractor.4} parent=84 // pred_fallthru
          _
      $region85: #{conv_feature_extractor.4} parent=5 // pred_fallthru
        _
    $region6: #{conv_feature_extractor.4} parent=1 // loop_footer
      %s14 = sadd.s32 1, %s10
    $region7: #{conv_feature_extractor.4} parent=1 // loop_footer_branch
      %9 = sbr.rel target = $region3
    $region8: #{conv_feature_extractor.4} parent=1 // loop_exit
      _

// kernel: conv_feature_extractor.3
$region0: #{conv_feature_extractor.3}
  #allocation0 [shape = 'u32[]', space=smem, size = 0x4, offset = 0x4, fixed_abs, tag = 'smem constant byte address 0x4 - core index']
  #allocation1 [shape = 'u32[144,128]{1,0:T(1,128)}', space=vmem, size = 0x12000, scoped, tag = 'internal scratch']
  %s0 = inlined_call_operand.vmem [shape: bf16[2,2,11,4], index: 0, kind: input, shape index: {}]
  %s1 = inlined_call_operand.vmem [shape: bf16[7,4,128], index: 1, kind: input, shape index: {}]
  %s2 = inlined_call_operand.vmem [shape: f32[1,128], index: 2, kind: input, shape index: {}]
  %s3 = inlined_call_operand.vmem [shape: f32[1,128], index: 3, kind: input, shape index: {}]
  %s4 = inlined_call_operand.vmem [shape: bf16[2,8,128], index: 4, kind: output, shape index: {}]
  %s5 = sld [smem:[#allocation0]]
  $region90: #{conv_feature_extractor.3} parent=0
    _
  %s7 = ssub.s32 1, %s5
  %s8 = scalar_select 0, %s7, %s5
  $region1: #{conv_feature_extractor.3} parent=0
    #allocation2 [shape = 'u8[16384]{0}', space=vmem, size = 0x4000, scoped, tag = 'input window, operand 0']
    loop: start=0, step=1, limit=4
    $region2: #{conv_feature_extractor.3} parent=1 // loop_pre_header
      _
    $region3: #{conv_feature_extractor.3} parent=1 // loop_header
      %s10 = sphi 0, %s14
      %p11 = scmp.ge.s32.totalorder %s10, 4
      %s17 = sphi 0, %s29
      %s18 = sphi 0, %s25
      %s19 = sphi 0, %s17
      %s20 = sphi 0, %s18
      %s21 = sphi 0, %s19
      %s22 = sphi 0, %s20
      %s32 = sphi 0, %s34
      %s35 = sphi 0, %s32
      %s36 = sphi 0, %s35
      %s52 = sphi 0, %s36
      %s58 = sphi 0, %s60
      %s61 = sphi 0, %s58
      %s62 = sphi 0, %s61
      %s78 = sphi 0, %s62
      %s84 = sphi 0, %s86
      %s87 = sphi 0, %s84
      %s88 = sphi 0, %s87
      %s104 = sphi 0, %s88
      %s110 = sphi 0, %s112
      %s113 = sphi 0, %s110
      %s114 = sphi 0, %s113
      %s130 = sphi 0, %s114
      %s138 = sphi 0, %s140
      %s141 = sphi 0, %s138
      %s142 = sphi 0, %s141
      %s158 = sphi 0, %s142
    $region4: #{conv_feature_extractor.3} parent=1 // loop_header_branch
      %13 = sbr.rel (%p11) target = $region8
    $region5: #{conv_feature_extractor.3} parent=1 // loop_body
      %s15 = ssub.s32 %s10, 1
      %s16 = ssub.s32 %s10, 2
      %s23 = sadd.s32 1, %s18
      %p24 = scmp.ge.s32.totalorder %s23, 1
      %s25 = scalar_select %p24, 0, %s23
      %s26 = sadd.s32 1, %s17
      %s27 = scalar_select %p24, %s26, %s17
      %p28 = scmp.ge.s32.totalorder %s27, 2
      %s29 = scalar_select %p28, 0, %s27
      %s30 = ssub.s32 %s17, %s29
      %p31 = scmp.eq.s32.totalorder %s30, 0
      %s33 = sadd.s32 %s32, 1
      %s34 = scalar_select %p31, %s32, %s33
      %p37 = pneg %p31
      %p38 = scmp.eq.s32.totalorder %s10, 1
      %p39 = por %p37, %p38
      %p40 = scmp.ne.s32.totalorder %s32, %s35
      %p41 = scmp.eq.s32.totalorder %s10, 0
      %p42 = por %p40, %p41
      %p43 = scmp.ne.s32.totalorder %s32, %s35
      %p44 = scmp.eq.s32.totalorder %s15, 1
      %p45 = por %p43, %p44
      %p46 = scmp.ne.s32.totalorder %s35, %s36
      %p47 = scmp.eq.s32.totalorder %s15, 0
      %p48 = por %p46, %p47
      %p49 = scmp.ne.s32.totalorder %s35, %s36
      %p50 = scmp.eq.s32.totalorder %s16, 1
      %p51 = por %p49, %p50
      %p53 = scmp.ne.s32.totalorder %s36, %s52
      %p54 = scmp.eq.s32.totalorder %s16, 0
      %p55 = por %p53, %p54
      %s56 = ssub.s32 %s18, %s25
      %p57 = scmp.eq.s32.totalorder %s56, 0
      %s59 = sadd.s32 %s58, 1
      %s60 = scalar_select %p57, %s58, %s59
      %p63 = pneg %p57
      %p64 = scmp.eq.s32.totalorder %s10, 1
      %p65 = por %p63, %p64
      %p66 = scmp.ne.s32.totalorder %s58, %s61
      %p67 = scmp.eq.s32.totalorder %s10, 0
      %p68 = por %p66, %p67
      %p69 = scmp.ne.s32.totalorder %s58, %s61
      %p70 = scmp.eq.s32.totalorder %s15, 1
      %p71 = por %p69, %p70
      %p72 = scmp.ne.s32.totalorder %s61, %s62
      %p73 = scmp.eq.s32.totalorder %s15, 0
      %p74 = por %p72, %p73
      %p75 = scmp.ne.s32.totalorder %s61, %s62
      %p76 = scmp.eq.s32.totalorder %s16, 1
      %p77 = por %p75, %p76
      %p79 = scmp.ne.s32.totalorder %s62, %s78
      %p80 = scmp.eq.s32.totalorder %s16, 0
      %p81 = por %p79, %p80
      %s82 = ssub.s32 %s18, %s25
      %p83 = scmp.eq.s32.totalorder %s82, 0
      %s85 = sadd.s32 %s84, 1
      %s86 = scalar_select %p83, %s84, %s85
      %p89 = pneg %p83
      %p90 = scmp.eq.s32.totalorder %s10, 1
      %p91 = por %p89, %p90
      %p92 = scmp.ne.s32.totalorder %s84, %s87
      %p93 = scmp.eq.s32.totalorder %s10, 0
      %p94 = por %p92, %p93
      %p95 = scmp.ne.s32.totalorder %s84, %s87
      %p96 = scmp.eq.s32.totalorder %s15, 1
      %p97 = por %p95, %p96
      %p98 = scmp.ne.s32.totalorder %s87, %s88
      %p99 = scmp.eq.s32.totalorder %s15, 0
      %p100 = por %p98, %p99
      %p101 = scmp.ne.s32.totalorder %s87, %s88
      %p102 = scmp.eq.s32.totalorder %s16, 1
      %p103 = por %p101, %p102
      %p105 = scmp.ne.s32.totalorder %s88, %s104
      %p106 = scmp.eq.s32.totalorder %s16, 0
      %p107 = por %p105, %p106
      %s108 = ssub.s32 %s18, %s25
      %p109 = scmp.eq.s32.totalorder %s108, 0
      %s111 = sadd.s32 %s110, 1
      %s112 = scalar_select %p109, %s110, %s111
      %p115 = pneg %p109
      %p116 = scmp.eq.s32.totalorder %s10, 1
      %p117 = por %p115, %p116
      %p118 = scmp.ne.s32.totalorder %s110, %s113
      %p119 = scmp.eq.s32.totalorder %s10, 0
      %p120 = por %p118, %p119
      %p121 = scmp.ne.s32.totalorder %s110, %s113
      %p122 = scmp.eq.s32.totalorder %s15, 1
      %p123 = por %p121, %p122
      %p124 = scmp.ne.s32.totalorder %s113, %s114
      %p125 = scmp.eq.s32.totalorder %s15, 0
      %p126 = por %p124, %p125
      %p127 = scmp.ne.s32.totalorder %s113, %s114
      %p128 = scmp.eq.s32.totalorder %s16, 1
      %p129 = por %p127, %p128
      %p131 = scmp.ne.s32.totalorder %s114, %s130
      %p132 = scmp.eq.s32.totalorder %s16, 0
      %p133 = por %p131, %p132
      %s134 = ssub.s32 %s17, %s29
      %s135 = ssub.s32 %s18, %s25
      %s136 = sor.u32 %s134, %s135
      %p137 = scmp.eq.s32.totalorder %s136, 0
      %s139 = sadd.s32 %s138, 1
      %s140 = scalar_select %p137, %s138, %s139
      %p143 = pneg %p137
      %p144 = scmp.eq.s32.totalorder %s10, 1
      %p145 = por %p143, %p144
      %p146 = scmp.ne.s32.totalorder %s138, %s141
      %p147 = scmp.eq.s32.totalorder %s10, 0
      %p148 = por %p146, %p147
      %p149 = scmp.ne.s32.totalorder %s138, %s141
      %p150 = scmp.eq.s32.totalorder %s15, 1
      %p151 = por %p149, %p150
      %p152 = scmp.ne.s32.totalorder %s141, %s142
      %p153 = scmp.eq.s32.totalorder %s15, 0
      %p154 = por %p152, %p153
      %p155 = scmp.ne.s32.totalorder %s141, %s142
      %p156 = scmp.eq.s32.totalorder %s16, 1
      %p157 = por %p155, %p156
      %p159 = scmp.ne.s32.totalorder %s142, %s158
      %p160 = scmp.eq.s32.totalorder %s16, 0
      %p161 = por %p159, %p160
      %p162 = scmp.le.s32.totalorder 1, %s10
      %p163 = scmp.lt.s32.totalorder %s10, 3
      %p164 = pnand %p162, %p163
      %p165 = pneg %p164
      // Predicated region
      $region9: #{conv_feature_extractor.3} parent=5 // pred_check
        _
      $region10: #{conv_feature_extractor.3} parent=5 // pred_check_branch
        %167 = sbr.rel (%p164) target = $region12
      $region11: #{conv_feature_extractor.3} parent=5 // pred_region
        %s168 = ssub.s32 %s10, 1
        // Predicated region
        $region13: #{conv_feature_extractor.3} parent=11 // pred_check
          %p169 = pneg %p74
        $region14: #{conv_feature_extractor.3} parent=11 // pred_check_branch
          %171 = sbr.rel (%p169) target = $region16
        $region15: #{conv_feature_extractor.3} parent=11 // pred_region
          %p172 = scmp.lt.s32.totalorder %s20, 0
          %s173 = scalar_select %p172, %s20, 0
          %s174 = smul.addr %s173, 2
          %s175 = scalar_lea.vmem %s1, %s174
        $region16: #{conv_feature_extractor.3} parent=11 // pred_fallthru
          _
        // Predicated region
        $region17: #{conv_feature_extractor.3} parent=11 // pred_check
          %p176 = pneg %p100
        $region18: #{conv_feature_extractor.3} parent=11 // pred_check_branch
          %178 = sbr.rel (%p176) target = $region20
        $region19: #{conv_feature_extractor.3} parent=11 // pred_region
          %p179 = scmp.lt.s32.totalorder %s20, 0
          %s180 = scalar_select %p179, %s20, 0
          %s181 = scalar_lea.vmem %s2, %s180
        $region20: #{conv_feature_extractor.3} parent=11 // pred_fallthru
          _
        // Predicated region
        $region21: #{conv_feature_extractor.3} parent=11 // pred_check
          %p182 = pneg %p126
        $region22: #{conv_feature_extractor.3} parent=11 // pred_check_branch
          %184 = sbr.rel (%p182) target = $region24
        $region23: #{conv_feature_extractor.3} parent=11 // pred_region
          %p185 = scmp.lt.s32.totalorder %s20, 0
          %s186 = scalar_select %p185, %s20, 0
          %s187 = scalar_lea.vmem %s3, %s186
        $region24: #{conv_feature_extractor.3} parent=11 // pred_fallthru
          _
      $region12: #{conv_feature_extractor.3} parent=5 // pred_fallthru
        _
      %p188 = scmp.lt.s32.totalorder %s10, 2
      // Predicated region
      $region25: #{conv_feature_extractor.3} parent=5 // pred_check
        %p189 = pneg %p188
      $region26: #{conv_feature_extractor.3} parent=5 // pred_check_branch
        %191 = sbr.rel (%p189) target = $region28
      $region27: #{conv_feature_extractor.3} parent=5 // pred_region
        // Predicated region
        $region29: #{conv_feature_extractor.3} parent=27 // pred_check
          %p192 = pneg %p42
        $region30: #{conv_feature_extractor.3} parent=27 // pred_check_branch
          %194 = sbr.rel (%p192) target = $region32
        $region31: #{conv_feature_extractor.3} parent=27 // pred_region
          %s195 = sand.u32 %s32, 1
          %s196 = sand.u32 %s32, 1
          %s197 = smul.addr %s196, 16
          %s198 = scalar_lea.vmem [#allocation2], %s197
          %s199 = smul.addr %s17, 2
          %s200 = smul.addr %s199, 4
          %s201 = scalar_lea.vmem %s0, %s200
          // Predicated region
          $region33: #{conv_feature_extractor.3} parent=31 // pred_check
            _
          $region34: #{conv_feature_extractor.3} parent=31 // pred_check_branch
            %203 = sbr.rel (0) target = $region36
          $region35: #{conv_feature_extractor.3} parent=31 // pred_region
            // Predicated region
            $region37: #{conv_feature_extractor.3} parent=35 // pred_check
              _
            $region38: #{conv_feature_extractor.3} parent=35 // pred_check_branch
              %205 = sbr.rel target = $region40
            $region39: #{conv_feature_extractor.3} parent=35 // pred_region
              // Predicated region
              $region52: #{conv_feature_extractor.3} parent=39 // pred_check
                _
              $region53: #{conv_feature_extractor.3} parent=39 // pred_check_branch
                %226 = sbr.rel (0) target = $region55
              $region54: #{conv_feature_extractor.3} parent=39 // pred_region
                loop: start=0, step=1, limit=1
                $region56: #{conv_feature_extractor.3} parent=54 // loop_pre_header
                  _
                $region57: #{conv_feature_extractor.3} parent=54 // loop_header
                  %s228 = sphi 0, %s232
                  %p229 = scmp.ge.s32.totalorder %s228, 1
                  %s233 = sphi %s201, %s201
                  %s234 = sphi %s198, %s198
                $region58: #{conv_feature_extractor.3} parent=54 // loop_header_branch
                  %231 = sbr.rel (%p229) target = $region62
                $region59: #{conv_feature_extractor.3} parent=54 // loop_body
                  _
                $region60: #{conv_feature_extractor.3} parent=54 // loop_footer
                  %s232 = sadd.s32 1, %s228
                $region61: #{conv_feature_extractor.3} parent=54 // loop_footer_branch
                  %227 = sbr.rel target = $region57
                $region62: #{conv_feature_extractor.3} parent=54 // loop_exit
                  _
                loop: start=0, step=1, limit=1
                $region63: #{conv_feature_extractor.3} parent=54 // loop_pre_header
                  _
                $region64: #{conv_feature_extractor.3} parent=54 // loop_header
                  %s237 = sphi 0, %s241
                  %p238 = scmp.ge.s32.totalorder %s237, 1
                  %s242 = sphi %s201, %s201
                  %s243 = sphi %s198, %s198
                $region65: #{conv_feature_extractor.3} parent=54 // loop_header_branch
                  %240 = sbr.rel (%p238) target = $region69
                $region66: #{conv_feature_extractor.3} parent=54 // loop_body
                  %v244 = vld [vmem:[%s242] sm:$0xf]
                  %245 = vst [vmem:[%s243] sm:$0xf] %v244
                  %v246 = vld [vmem:[%s242 + $0x4] sm:$0xf]
                  %247 = vst [vmem:[%s243 + $0x4] sm:$0xf] %v246
                  %v248 = vld [vmem:[%s242 + $0x10] sm:$0xf]
                  %249 = vst [vmem:[%s243 + $0x8] sm:$0xf] %v248
                  %v250 = vld [vmem:[%s242 + $0x14] sm:$0xf]
                  %251 = vst [vmem:[%s243 + $0xc] sm:$0xf] %v250
                $region67: #{conv_feature_extractor.3} parent=54 // loop_footer
                  %s241 = sadd.s32 1, %s237
                $region68: #{conv_feature_extractor.3} parent=54 // loop_footer_branch
                  %236 = sbr.rel target = $region64
                $region69: #{conv_feature_extractor.3} parent=54 // loop_exit
                  _
              $region55: #{conv_feature_extractor.3} parent=39 // pred_fallthru
                _
            $region40: #{conv_feature_extractor.3} parent=35 // pred_fallthru
              _
            // Predicated region
            $region41: #{conv_feature_extractor.3} parent=35 // pred_check
              _
            $region42: #{conv_feature_extractor.3} parent=35 // pred_check_branch
              %207 = sbr.rel (0) target = $region44
            $region43: #{conv_feature_extractor.3} parent=35 // pred_region
              loop: start=0, step=1, limit=1
              $region45: #{conv_feature_extractor.3} parent=43 // loop_pre_header
                _
              $region46: #{conv_feature_extractor.3} parent=43 // loop_header
                %s210 = sphi 0, %s214
                %p211 = scmp.ge.s32.totalorder %s210, 1
                %s215 = sphi %s201, %s201
                %s216 = sphi %s198, %s198
              $region47: #{conv_feature_extractor.3} parent=43 // loop_header_branch
                %213 = sbr.rel (%p211) target = $region51
              $region48: #{conv_feature_extractor.3} parent=43 // loop_body
                %v217 = vld [vmem:[%s215] sm:$0xf]
                %218 = vst [vmem:[%s216] sm:$0xf] %v217
                %v219 = vld [vmem:[%s215 + $0x4] sm:$0xf]
                %220 = vst [vmem:[%s216 + $0x4] sm:$0xf] %v219
                %v221 = vld [vmem:[%s215 + $0x10] sm:$0xf]
                %222 = vst [vmem:[%s216 + $0x8] sm:$0xf] %v221
                %v223 = vld [vmem:[%s215 + $0x14] sm:$0xf]
                %224 = vst [vmem:[%s216 + $0xc] sm:$0xf] %v223
              $region49: #{conv_feature_extractor.3} parent=43 // loop_footer
                %s214 = sadd.s32 1, %s210
              $region50: #{conv_feature_extractor.3} parent=43 // loop_footer_branch
                %209 = sbr.rel target = $region46
              $region51: #{conv_feature_extractor.3} parent=43 // loop_exit
                _
            $region44: #{conv_feature_extractor.3} parent=35 // pred_fallthru
              _
          $region36: #{conv_feature_extractor.3} parent=31 // pred_fallthru
            _
          %252 = vnop
        $region32: #{conv_feature_extractor.3} parent=27 // pred_fallthru
          _
      $region28: #{conv_feature_extractor.3} parent=5 // pred_fallthru
        _
      %p253 = scmp.le.s32.totalorder 1, %s10
      %p254 = scmp.lt.s32.totalorder %s10, 3
      %p255 = pnand %p253, %p254
      %p256 = pneg %p255
      // Predicated region
      $region70: #{conv_feature_extractor.3} parent=5 // pred_check
        _
      $region71: #{conv_feature_extractor.3} parent=5 // pred_check_branch
        %258 = sbr.rel (%p255) target = $region73
      $region72: #{conv_feature_extractor.3} parent=5 // pred_region
        %s259 = ssub.s32 %s10, 1
        %s260 = sand.u32 %s35, 1
        %s261 = sand.u32 %s35, 1
        %s262 = smul.addr %s261, 16
        %s263 = scalar_lea.vmem [#allocation2], %s262
        // Predicated region
        $region74: #{conv_feature_extractor.3} parent=72 // pred_check
          %p264 = pneg %p48
        $region75: #{conv_feature_extractor.3} parent=72 // pred_check_branch
          %266 = sbr.rel (%p264) target = $region77
        $region76: #{conv_feature_extractor.3} parent=72 // pred_region
          _
        $region77: #{conv_feature_extractor.3} parent=72 // pred_fallthru
          _
        %s267 = sand.u32 %s35, 1
        %s268 = sand.u32 %s35, 1
        %s269 = smul.addr %s268, 16
        %s270 = scalar_lea.vmem [#allocation2], %s269
        %p271 = pneg %p48
        %p272 = pneg %p45
        %p273 = scmp.lt.s32.totalorder %s20, 0
        %s274 = scalar_select %p273, %s20, 0
        %s275 = smul.addr %s274, 2
        %s276 = scalar_lea.vmem %s1, %s275
        %p277 = pneg %p74
        %p278 = pneg %p71
        %p279 = scmp.lt.s32.totalorder %s20, 0
        %s280 = scalar_select %p279, %s20, 0
        %s281 = scalar_lea.vmem %s2, %s280
        %p282 = pneg %p100
        %p283 = pneg %p97
        %p284 = scmp.lt.s32.totalorder %s20, 0
        %s285 = scalar_select %p284, %s20, 0
        %s286 = scalar_lea.vmem %s3, %s285
        %p287 = pneg %p126
        %p288 = pneg %p123
        %p289 = pneg %p154
        %p290 = pneg %p151
        %p291 = scmp.lt.s32.totalorder %s19, 1
        %s292 = scalar_select %p291, %s19, 1
        %p293 = scmp.lt.s32.totalorder %s20, 0
        %s294 = scalar_select %p293, %s20, 0
        %s295 = sadd.s32 %s294, %s292
        %s296 = smul.addr %s295, 4
        %s297 = scalar_lea.vmem %s4, %s296
        %p298 = scmp.lt.s32.totalorder %s20, 0
        %s299 = scalar_select %p298, %s20, 0
        %s300 = smul.addr %s299, 2
        %s301 = scalar_lea.vmem %s1, %s300
        %p302 = scmp.lt.s32.totalorder %s20, 0
        %s303 = scalar_select %p302, %s20, 0
        %s304 = scalar_lea.vmem %s2, %s303
        %p305 = scmp.lt.s32.totalorder %s20, 0
        %s306 = scalar_select %p305, %s20, 0
        %s307 = scalar_lea.vmem %s3, %s306
        %p308 = scmp.lt.s32.totalorder %s19, 1
        %s309 = scalar_select %p308, %s19, 1
        %p310 = scmp.lt.s32.totalorder %s20, 0
        %s311 = scalar_select %p310, %s20, 0
        %s312 = sadd.s32 %s311, %s309
        %s313 = smul.addr %s312, 4
        %s314 = scalar_lea.vmem %s4, %s313
        %v316 = vld [vmem:[%s263] sm:$0xf]
        %v317 = vld [vmem:[%s301] sm:$0x3]
        %s318 = scalar_lea.vmem %s263, 8 [#allocation2]
        %v319 = vld [vmem:[%s318] sm:$0xf]
        %s320 = scalar_lea.vmem %s301, 2
        %v321 = vld [vmem:[%s320] sm:$0x3]
        %vm322 = vcmask 31744
        %v324 = vsel %vm322, %v319, 0
        %vm326 = vcmask 1041408
        %v328 = vsel %vm326, %v321, 0
        %330 = vmatprep.subr.bf16.mxu0 0
        %331 = vmatpush1.bf16.msra.mxu0 %v328
        %332 = vmatprep.subr.bf16.mxu0 0
        %333 = vmatpush1.bf16.msra.mxu0 0
        %334 = vmatprep.subr.bf16.mxu0 0
        %335 = vmatpush1.bf16.msra.mxu0 0
        %336 = vmatprep.subr.bf16.mxu0 0
        %337 = vmatpush1.bf16.msra.mxu0 0
        %338 = vmatprep.subr.bf16.mxu0 0
        %339 = vmatpush1.bf16.msra.mxu0 0
        %340 = vmatprep.subr.bf16.mxu0 0
        %341 = vmatpush1.bf16.msra.mxu0 0
        %342 = vmatprep.subr.bf16.mxu0 0
        %343 = vmatpush1.bf16.msra.mxu0 0
        %344 = vmatprep.subr.bf16.mxu0 0
        %345 = vmatpush1.bf16.msra.mxu0 0
        %346 = vmatprep.subr.bf16.mxu0 0
        %347 = vmatpush1.bf16.msra.mxu0 0
        %348 = vmatprep.subr.bf16.mxu0 0
        %349 = vmatpush1.bf16.msra.mxu0 0
        %350 = vmatprep.subr.bf16.mxu0 0
        %351 = vmatpush1.bf16.msra.mxu0 0
        %352 = vmatprep.subr.bf16.mxu0 0
        %353 = vmatpush1.bf16.msra.mxu0 0
        %354 = vmatprep.subr.bf16.mxu0 0
        %355 = vmatpush1.bf16.msra.mxu0 0
        %356 = vmatprep.subr.bf16.mxu0 0
        %357 = vmatpush1.bf16.msra.mxu0 0
        %358 = vmatprep.subr.bf16.mxu0 0
        %359 = vmatpush1.bf16.msra.mxu0 0
        %360 = vmatprep.subr.bf16.mxu0 0
        %361 = vmatpush1.bf16.msra.mxu0 0
        %362 = vmatprep.mubr.bf16.mxu0 0
        %363 = vmatmul.mubr.bf16.gmra.mrb[0].mxu0 %v324
        %v364 = vpop.f32.mrb[0].mxu0
        %v365 = vadd.f32 0.0, %v364
        %v366 = vpop.f32.mrb[0].mxu0
        %v367 = vpop.f32.mrb[0].mxu0
        %v368 = vpop.f32.mrb[0].mxu0
        %369 = vdwg.mxu0
        %v371 = vsel %vm322, %v316, 0
        %v374 = vsel %vm326, %v317, 0
        %376 = vmatprep.subr.bf16.mxu0 0
        %377 = vmatpush1.bf16.msra.mxu0 %v374
        %378 = vmatprep.subr.bf16.mxu0 0
        %379 = vmatpush1.bf16.msra.mxu0 0
        %380 = vmatprep.subr.bf16.mxu0 0
        %381 = vmatpush1.bf16.msra.mxu0 0
        %382 = vmatprep.subr.bf16.mxu0 0
        %383 = vmatpush1.bf16.msra.mxu0 0
        %384 = vmatprep.subr.bf16.mxu0 0
        %385 = vmatpush1.bf16.msra.mxu0 0
        %386 = vmatprep.subr.bf16.mxu0 0
        %387 = vmatpush1.bf16.msra.mxu0 0
        %388 = vmatprep.subr.bf16.mxu0 0
        %389 = vmatpush1.bf16.msra.mxu0 0
        %390 = vmatprep.subr.bf16.mxu0 0
        %391 = vmatpush1.bf16.msra.mxu0 0
        %392 = vmatprep.subr.bf16.mxu0 0
        %393 = vmatpush1.bf16.msra.mxu0 0
        %394 = vmatprep.subr.bf16.mxu0 0
        %395 = vmatpush1.bf16.msra.mxu0 0
        %396 = vmatprep.subr.bf16.mxu0 0
        %397 = vmatpush1.bf16.msra.mxu0 0
        %398 = vmatprep.subr.bf16.mxu0 0
        %399 = vmatpush1.bf16.msra.mxu0 0
        %400 = vmatprep.subr.bf16.mxu0 0
        %401 = vmatpush1.bf16.msra.mxu0 0
        %402 = vmatprep.subr.bf16.mxu0 0
        %403 = vmatpush1.bf16.msra.mxu0 0
        %404 = vmatprep.subr.bf16.mxu0 0
        %405 = vmatpush1.bf16.msra.mxu0 0
        %406 = vmatprep.subr.bf16.mxu0 0
        %407 = vmatpush1.bf16.msra.mxu0 0
        %408 = vmatprep.mubr.bf16.mxu0 0
        %409 = vmatmul.mubr.bf16.gmra.mrb[0].mxu0 %v371
        %v410 = vpop.f32.mrb[0].mxu0
        %v411 = vadd.f32 %v365, %v410
        %v412 = vpop.f32.mrb[0].mxu0
        %v413 = vpop.f32.mrb[0].mxu0
        %v414 = vpop.f32.mrb[0].mxu0
        %415 = vdwg.mxu0
        %v416 = vld [vmem:[%s263] sm:$0xf]
        %v417 = vld [vmem:[%s263 + $0x4] sm:$0x1]
        %s418 = scalar_lea.vmem %s301, 4
        %v419 = vld [vmem:[%s418] sm:$0x3]
        %v422 = vunpack.c.l.b16 %v416
        %v423 = vunpack.c.l.b16 %v417
        %v424 = vpack.c.b16 %v423, %v422
        %v426 = vshrl.u32 %v424, 16
        %v428 = vshll.u32 %v424, 16
        %v430 = vrot.slane %v428, 1
        %v431 = vor.u32 %v426, %v430
        %v433 = vsel %vm322, %v431, 0
        %v436 = vsel %vm326, %v419, 0
        %438 = vmatprep.subr.bf16.mxu0 0
        %439 = vmatpush1.bf16.msra.mxu0 %v436
        %440 = vmatprep.subr.bf16.mxu0 0
        %441 = vmatpush1.bf16.msra.mxu0 0
        %442 = vmatprep.subr.bf16.mxu0 0
        %443 = vmatpush1.bf16.msra.mxu0 0
        %444 = vmatprep.subr.bf16.mxu0 0
        %445 = vmatpush1.bf16.msra.mxu0 0
        %446 = vmatprep.subr.bf16.mxu0 0
        %447 = vmatpush1.bf16.msra.mxu0 0
        %448 = vmatprep.subr.bf16.mxu0 0
        %449 = vmatpush1.bf16.msra.mxu0 0
        %450 = vmatprep.subr.bf16.mxu0 0
        %451 = vmatpush1.bf16.msra.mxu0 0
        %452 = vmatprep.subr.bf16.mxu0 0
        %453 = vmatpush1.bf16.msra.mxu0 0
        %454 = vmatprep.subr.bf16.mxu0 0
        %455 = vmatpush1.bf16.msra.mxu0 0
        %456 = vmatprep.subr.bf16.mxu0 0
        %457 = vmatpush1.bf16.msra.mxu0 0
        %458 = vmatprep.subr.bf16.mxu0 0
        %459 = vmatpush1.bf16.msra.mxu0 0
        %460 = vmatprep.subr.bf16.mxu0 0
        %461 = vmatpush1.bf16.msra.mxu0 0
        %462 = vmatprep.subr.bf16.mxu0 0
        %463 = vmatpush1.bf16.msra.mxu0 0
        %464 = vmatprep.subr.bf16.mxu0 0
        %465 = vmatpush1.bf16.msra.mxu0 0
        %466 = vmatprep.subr.bf16.mxu0 0
        %467 = vmatpush1.bf16.msra.mxu0 0
        %468 = vmatprep.subr.bf16.mxu0 0
        %469 = vmatpush1.bf16.msra.mxu0 0
        %470 = vmatprep.mubr.bf16.mxu0 0
        %471 = vmatmul.mubr.bf16.gmra.mrb[0].mxu0 %v433
        %v472 = vpop.f32.mrb[0].mxu0
        %v473 = vadd.f32 0.0, %v472
        %v474 = vpop.f32.mrb[0].mxu0
        %v475 = vpop.f32.mrb[0].mxu0
        %v476 = vpop.f32.mrb[0].mxu0
        %477 = vdwg.mxu0
        %v478 = vadd.f32 %v411, %v473
        %v479 = vld [vmem:[%s318] sm:$0xf]
        %v480 = vld [vmem:[%s318 + $0x4] sm:$0x1]
        %s481 = scalar_lea.vmem %s301, 6
        %v482 = vld [vmem:[%s481] sm:$0x3]
        %v485 = vunpack.c.l.b16 %v479
        %v486 = vunpack.c.l.b16 %v480
        %v487 = vpack.c.b16 %v486, %v485
        %v489 = vshrl.u32 %v487, 16
        %v491 = vshll.u32 %v487, 16
        %v493 = vrot.slane %v491, 1
        %v494 = vor.u32 %v489, %v493
        %v496 = vsel %vm322, %v494, 0
        %v499 = vsel %vm326, %v482, 0
        %501 = vmatprep.subr.bf16.mxu0 0
        %502 = vmatpush1.bf16.msra.mxu0 %v499
        %503 = vmatprep.subr.bf16.mxu0 0
        %504 = vmatpush1.bf16.msra.mxu0 0
        %505 = vmatprep.subr.bf16.mxu0 0
        %506 = vmatpush1.bf16.msra.mxu0 0
        %507 = vmatprep.subr.bf16.mxu0 0
        %508 = vmatpush1.bf16.msra.mxu0 0
        %509 = vmatprep.subr.bf16.mxu0 0
        %510 = vmatpush1.bf16.msra.mxu0 0
        %511 = vmatprep.subr.bf16.mxu0 0
        %512 = vmatpush1.bf16.msra.mxu0 0
        %513 = vmatprep.subr.bf16.mxu0 0
        %514 = vmatpush1.bf16.msra.mxu0 0
        %515 = vmatprep.subr.bf16.mxu0 0
        %516 = vmatpush1.bf16.msra.mxu0 0
        %517 = vmatprep.subr.bf16.mxu0 0
        %518 = vmatpush1.bf16.msra.mxu0 0
        %519 = vmatprep.subr.bf16.mxu0 0
        %520 = vmatpush1.bf16.msra.mxu0 0
        %521 = vmatprep.subr.bf16.mxu0 0
        %522 = vmatpush1.bf16.msra.mxu0 0
        %523 = vmatprep.subr.bf16.mxu0 0
        %524 = vmatpush1.bf16.msra.mxu0 0
        %525 = vmatprep.subr.bf16.mxu0 0
        %526 = vmatpush1.bf16.msra.mxu0 0
        %527 = vmatprep.subr.bf16.mxu0 0
        %528 = vmatpush1.bf16.msra.mxu0 0
        %529 = vmatprep.subr.bf16.mxu0 0
        %530 = vmatpush1.bf16.msra.mxu0 0
        %531 = vmatprep.subr.bf16.mxu0 0
        %532 = vmatpush1.bf16.msra.mxu0 0
        %533 = vmatprep.mubr.bf16.mxu0 0
        %534 = vmatmul.mubr.bf16.gmra.mrb[0].mxu0 %v496
        %v535 = vpop.f32.mrb[0].mxu0
        %v536 = vadd.f32 0.0, %v535
        %v537 = vpop.f32.mrb[0].mxu0
        %v538 = vpop.f32.mrb[0].mxu0
        %v539 = vpop.f32.mrb[0].mxu0
        %540 = vdwg.mxu0
        %v541 = vadd.f32 %v478, %v536
        %v542 = vld [vmem:[%s263] sm:$0xe]
        %s543 = scalar_lea.vmem %s301, 8
        %v544 = vld [vmem:[%s543] sm:$0x3]
        %v546 = vunpack.c.l.b16 %v542
        %v547 = vpack.c.b16 %v423, %v546
        %v548 = vrot.slane %v547, 1
        %v550 = vsel %vm322, %v548, 0
        %v553 = vsel %vm326, %v544, 0
        %555 = vmatprep.subr.bf16.mxu0 0
        %556 = vmatpush1.bf16.msra.mxu0 %v553
        %557 = vmatprep.subr.bf16.mxu0 0
        %558 = vmatpush1.bf16.msra.mxu0 0
        %559 = vmatprep.subr.bf16.mxu0 0
        %560 = vmatpush1.bf16.msra.mxu0 0
        %561 = vmatprep.subr.bf16.mxu0 0
        %562 = vmatpush1.bf16.msra.mxu0 0
        %563 = vmatprep.subr.bf16.mxu0 0
        %564 = vmatpush1.bf16.msra.mxu0 0
        %565 = vmatprep.subr.bf16.mxu0 0
        %566 = vmatpush1.bf16.msra.mxu0 0
        %567 = vmatprep.subr.bf16.mxu0 0
        %568 = vmatpush1.bf16.msra.mxu0 0
        %569 = vmatprep.subr.bf16.mxu0 0
        %570 = vmatpush1.bf16.msra.mxu0 0
        %571 = vmatprep.subr.bf16.mxu0 0
        %572 = vmatpush1.bf16.msra.mxu0 0
        %573 = vmatprep.subr.bf16.mxu0 0
        %574 = vmatpush1.bf16.msra.mxu0 0
        %575 = vmatprep.subr.bf16.mxu0 0
        %576 = vmatpush1.bf16.msra.mxu0 0
        %577 = vmatprep.subr.bf16.mxu0 0
        %578 = vmatpush1.bf16.msra.mxu0 0
        %579 = vmatprep.subr.bf16.mxu0 0
        %580 = vmatpush1.bf16.msra.mxu0 0
        %581 = vmatprep.subr.bf16.mxu0 0
        %582 = vmatpush1.bf16.msra.mxu0 0
        %583 = vmatprep.subr.bf16.mxu0 0
        %584 = vmatpush1.bf16.msra.mxu0 0
        %585 = vmatprep.subr.bf16.mxu0 0
        %586 = vmatpush1.bf16.msra.mxu0 0
        %587 = vmatprep.mubr.bf16.mxu0 0
        %588 = vmatmul.mubr.bf16.gmra.mrb[0].mxu0 %v550
        %v589 = vpop.f32.mrb[0].mxu0
        %v590 = vadd.f32 0.0, %v589
        %v591 = vpop.f32.mrb[0].mxu0
        %v592 = vpop.f32.mrb[0].mxu0
        %v593 = vpop.f32.mrb[0].mxu0
        %594 = vdwg.mxu0
        %v595 = vadd.f32 %v541, %v590
        %v596 = vld [vmem:[%s318] sm:$0xe]
        %s597 = scalar_lea.vmem %s301, 10
        %v598 = vld [vmem:[%s597] sm:$0x3]
        %v600 = vunpack.c.l.b16 %v596
        %v601 = vpack.c.b16 %v486, %v600
        %v602 = vrot.slane %v601, 1
        %v604 = vsel %vm322, %v602, 0
        %v607 = vsel %vm326, %v598, 0
        %609 = vmatprep.subr.bf16.mxu0 0
        %610 = vmatpush1.bf16.msra.mxu0 %v607
        %611 = vmatprep.subr.bf16.mxu0 0
        %612 = vmatpush1.bf16.msra.mxu0 0
        %613 = vmatprep.subr.bf16.mxu0 0
        %614 = vmatpush1.bf16.msra.mxu0 0
        %615 = vmatprep.subr.bf16.mxu0 0
        %616 = vmatpush1.bf16.msra.mxu0 0
        %617 = vmatprep.subr.bf16.mxu0 0
        %618 = vmatpush1.bf16.msra.mxu0 0
        %619 = vmatprep.subr.bf16.mxu0 0
        %620 = vmatpush1.bf16.msra.mxu0 0
        %621 = vmatprep.subr.bf16.mxu0 0
        %622 = vmatpush1.bf16.msra.mxu0 0
        %623 = vmatprep.subr.bf16.mxu0 0
        %624 = vmatpush1.bf16.msra.mxu0 0
        %625 = vmatprep.subr.bf16.mxu0 0
        %626 = vmatpush1.bf16.msra.mxu0 0
        %627 = vmatprep.subr.bf16.mxu0 0
        %628 = vmatpush1.bf16.msra.mxu0 0
        %629 = vmatprep.subr.bf16.mxu0 0
        %630 = vmatpush1.bf16.msra.mxu0 0
        %631 = vmatprep.subr.bf16.mxu0 0
        %632 = vmatpush1.bf16.msra.mxu0 0
        %633 = vmatprep.subr.bf16.mxu0 0
        %634 = vmatpush1.bf16.msra.mxu0 0
        %635 = vmatprep.subr.bf16.mxu0 0
        %636 = vmatpush1.bf16.msra.mxu0 0
        %637 = vmatprep.subr.bf16.mxu0 0
        %638 = vmatpush1.bf16.msra.mxu0 0
        %639 = vmatprep.subr.bf16.mxu0 0
        %640 = vmatpush1.bf16.msra.mxu0 0
        %641 = vmatprep.mubr.bf16.mxu0 0
        %642 = vmatmul.mubr.bf16.gmra.mrb[0].mxu0 %v604
        %v643 = vpop.f32.mrb[0].mxu0
        %v644 = vadd.f32 0.0, %v643
        %v645 = vpop.f32.mrb[0].mxu0
        %v646 = vpop.f32.mrb[0].mxu0
        %v647 = vpop.f32.mrb[0].mxu0
        %648 = vdwg.mxu0
        %v649 = vadd.f32 %v595, %v644
        %v650 = vld [vmem:[%s263 + $0x4] sm:$0x3]
        %s651 = scalar_lea.vmem %s301, 12
        %v652 = vld [vmem:[%s651] sm:$0x3]
        %v654 = vunpack.c.l.b16 %v650
        %v655 = vpack.c.b16 %v654, %v546
        %v657 = vshrl.u32 %v655, 16
        %v659 = vrot.slane %v657, 1
        %v660 = vshll.u32 %v655, 16
        %v662 = vrot.slane %v660, 2
        %v663 = vor.u32 %v659, %v662
        %v665 = vsel %vm322, %v663, 0
        %v668 = vsel %vm326, %v652, 0
        %670 = vmatprep.subr.bf16.mxu0 0
        %671 = vmatpush1.bf16.msra.mxu0 %v668
        %672 = vmatprep.subr.bf16.mxu0 0
        %673 = vmatpush1.bf16.msra.mxu0 0
        %674 = vmatprep.subr.bf16.mxu0 0
        %675 = vmatpush1.bf16.msra.mxu0 0
        %676 = vmatprep.subr.bf16.mxu0 0
        %677 = vmatpush1.bf16.msra.mxu0 0
        %678 = vmatprep.subr.bf16.mxu0 0
        %679 = vmatpush1.bf16.msra.mxu0 0
        %680 = vmatprep.subr.bf16.mxu0 0
        %681 = vmatpush1.bf16.msra.mxu0 0
        %682 = vmatprep.subr.bf16.mxu0 0
        %683 = vmatpush1.bf16.msra.mxu0 0
        %684 = vmatprep.subr.bf16.mxu0 0
        %685 = vmatpush1.bf16.msra.mxu0 0
        %686 = vmatprep.subr.bf16.mxu0 0
        %687 = vmatpush1.bf16.msra.mxu0 0
        %688 = vmatprep.subr.bf16.mxu0 0
        %689 = vmatpush1.bf16.msra.mxu0 0
        %690 = vmatprep.subr.bf16.mxu0 0
        %691 = vmatpush1.bf16.msra.mxu0 0
        %692 = vmatprep.subr.bf16.mxu0 0
        %693 = vmatpush1.bf16.msra.mxu0 0
        %694 = vmatprep.subr.bf16.mxu0 0
        %695 = vmatpush1.bf16.msra.mxu0 0
        %696 = vmatprep.subr.bf16.mxu0 0
        %697 = vmatpush1.bf16.msra.mxu0 0
        %698 = vmatprep.subr.bf16.mxu0 0
        %699 = vmatpush1.bf16.msra.mxu0 0
        %700 = vmatprep.subr.bf16.mxu0 0
        %701 = vmatpush1.bf16.msra.mxu0 0
        %702 = vmatprep.mubr.bf16.mxu0 0
        %703 = vmatmul.mubr.bf16.gmra.mrb[0].mxu0 %v665
        %v704 = vpop.f32.mrb[0].mxu0
        %v705 = vadd.f32 0.0, %v704
        %v706 = vpop.f32.mrb[0].mxu0
        %v707 = vpop.f32.mrb[0].mxu0
        %v708 = vpop.f32.mrb[0].mxu0
        %709 = vdwg.mxu0
        %v710 = vadd.f32 %v649, %v705
        %v711 = vld [vmem:[%s304] sm:$0x1]
        %v713 = vlaneseq
        %v714 = vshrl.u32 %v713, 7
        %v715 = vsub.s32 0, %v714
        %v716 = vrot.slane %v711, %v715
        %v718 = vmul.f32 %v710, %v716
        %v719 = vld [vmem:[%s307] sm:$0x1]
        %v721 = vlaneseq
        %v722 = vshrl.u32 %v721, 7
        %v723 = vsub.s32 0, %v722
        %v724 = vrot.slane %v719, %v723
        %v726 = vadd.f32 %v718, %v724
        %v727 = vmax.f32 %v726, 0.0
        %v728 = vpack.c.bf16 %v727, %v727
        %729 = vst [vmem:[%s314] sm:$0xf] %v728
        %p730 = scmp.lt.s32.totalorder %s19, 1
        %s731 = scalar_select %p730, %s19, 1
        %p732 = scmp.lt.s32.totalorder %s20, 0
        %s733 = scalar_select %p732, %s20, 0
        %s734 = sadd.s32 %s733, %s731
        %s735 = smul.addr %s734, 4
        %s736 = scalar_lea.vmem %s4, %s735
        // Predicated region
        $region78: #{conv_feature_extractor.3} parent=72 // pred_check
          %p737 = pneg %p151
        $region79: #{conv_feature_extractor.3} parent=72 // pred_check_branch
          %739 = sbr.rel (%p737) target = $region81
        $region80: #{conv_feature_extractor.3} parent=72 // pred_region
          _
        $region81: #{conv_feature_extractor.3} parent=72 // pred_fallthru
          _
      $region73: #{conv_feature_extractor.3} parent=5 // pred_fallthru
        _
      %p740 = scmp.le.s32.totalorder 2, %s10
      // Predicated region
      $region82: #{conv_feature_extractor.3} parent=5 // pred_check
        %p741 = pneg %p740
      $region83: #{conv_feature_extractor.3} parent=5 // pred_check_branch
        %743 = sbr.rel (%p741) target = $region85
      $region84: #{conv_feature_extractor.3} parent=5 // pred_region
        %s744 = ssub.s32 %s10, 2
        // Predicated region
        $region86: #{conv_feature_extractor.3} parent=84 // pred_check
          %p745 = pneg %p157
        $region87: #{conv_feature_extractor.3} parent=84 // pred_check_branch
          %747 = sbr.rel (%p745) target = $region89
        $region88: #{conv_feature_extractor.3} parent=84 // pred_region
          %p748 = scmp.lt.s32.totalorder %s21, 1
          %s749 = scalar_select %p748, %s21, 1
          %p750 = scmp.lt.s32.totalorder %s22, 0
          %s751 = scalar_select %p750, %s22, 0
          %s752 = sadd.s32 %s751, %s749
          %s753 = smul.addr %s752, 4
          %s754 = scalar_lea.vmem %s4, %s753
        $region89: #{conv_feature_extractor.3} parent=84 // pred_fallthru
          _
      $region85: #{conv_feature_extractor.3} parent=5 // pred_fallthru
        _
    $region6: #{conv_feature_extractor.3} parent=1 // loop_footer
      %s14 = sadd.s32 1, %s10
    $region7: #{conv_feature_extractor.3} parent=1 // loop_footer_branch
      %9 = sbr.rel target = $region3
    $region8: #{conv_feature_extractor.3} parent=1 // loop_exit
      _

// kernel: conv_feature_extractor.5
$region0: #{conv_feature_extractor.5}
  #allocation0 [shape = 'u32[]', space=smem, size = 0x4, offset = 0x4, fixed_abs, tag = 'smem constant byte address 0x4 - core index']
  #allocation1 [shape = 'u32[144,128]{1,0:T(1,128)}', space=vmem, size = 0x12000, scoped, tag = 'internal scratch']
  %s0 = inlined_call_operand.vmem [shape: bf16[2,2,3,128], index: 0, kind: input, shape index: {}]
  %s1 = inlined_call_operand.vmem [shape: bf16[3,128,256], index: 1, kind: input, shape index: {}]
  %s2 = inlined_call_operand.vmem [shape: f32[1,256], index: 2, kind: input, shape index: {}]
  %s3 = inlined_call_operand.vmem [shape: f32[1,256], index: 3, kind: input, shape index: {}]
  %s4 = inlined_call_operand.hbm [shape: f32[2,2,256], index: 4, kind: output, shape index: {}]
  %s5 = sld [smem:[#allocation0]]
  $region83: #{conv_feature_extractor.5} parent=0
    _
  %s7 = ssub.s32 1, %s5
  %s8 = scalar_select 0, %s7, %s5
  $region1: #{conv_feature_extractor.5} parent=0
    #allocation2 [shape = 'u8[4096]{0}', space=vmem, size = 0x1000, scoped, tag = 'input window, operand 0']
    #allocation3 [shape = 'u8[4096]{0}', space=vmem, size = 0x1000, scoped, tag = 'output window, operand 0']
    #allocation4 [shape = 's32[2]{0}', space=sflag, size = 0x8, scoped, tag = 'scoped memory for conv_feature_extractor.5']
    %9 = vsyncpa [#allocation4], 0
    %s10 = scalar_lea.sflag [#allocation4], 1
    %11 = vsyncpa %s10, 0
    loop: start=0, step=1, limit=4
    $region2: #{conv_feature_extractor.5} parent=1 // loop_pre_header
      _
    $region3: #{conv_feature_extractor.5} parent=1 // loop_header
      %s13 = sphi 0, %s17
      %p14 = scmp.ge.s32.totalorder %s13, 4
      %s20 = sphi 0, %s32
      %s21 = sphi 0, %s28
      %s22 = sphi 0, %s20
      %s23 = sphi 0, %s21
      %s24 = sphi 0, %s22
      %s25 = sphi 0, %s23
      %s35 = sphi 0, %s37
      %s38 = sphi 0, %s35
      %s39 = sphi 0, %s38
      %s55 = sphi 0, %s39
      %s61 = sphi 0, %s63
      %s64 = sphi 0, %s61
      %s65 = sphi 0, %s64
      %s81 = sphi 0, %s65
      %s87 = sphi 0, %s89
      %s90 = sphi 0, %s87
      %s91 = sphi 0, %s90
      %s107 = sphi 0, %s91
      %s113 = sphi 0, %s115
      %s116 = sphi 0, %s113
      %s117 = sphi 0, %s116
      %s133 = sphi 0, %s117
      %s141 = sphi 0, %s143
      %s144 = sphi 0, %s141
      %s145 = sphi 0, %s144
      %s161 = sphi 0, %s145
    $region4: #{conv_feature_extractor.5} parent=1 // loop_header_branch
      %16 = sbr.rel (%p14) target = $region8
    $region5: #{conv_feature_extractor.5} parent=1 // loop_body
      %s18 = ssub.s32 %s13, 1
      %s19 = ssub.s32 %s13, 2
      %s26 = sadd.s32 1, %s21
      %p27 = scmp.ge.s32.totalorder %s26, 1
      %s28 = scalar_select %p27, 0, %s26
      %s29 = sadd.s32 1, %s20
      %s30 = scalar_select %p27, %s29, %s20
      %p31 = scmp.ge.s32.totalorder %s30, 2
      %s32 = scalar_select %p31, 0, %s30
      %s33 = ssub.s32 %s20, %s32
      %p34 = scmp.eq.s32.totalorder %s33, 0
      %s36 = sadd.s32 %s35, 1
      %s37 = scalar_select %p34, %s35, %s36
      %p40 = pneg %p34
      %p41 = scmp.eq.s32.totalorder %s13, 1
      %p42 = por %p40, %p41
      %p43 = scmp.ne.s32.totalorder %s35, %s38
      %p44 = scmp.eq.s32.totalorder %s13, 0
      %p45 = por %p43, %p44
      %p46 = scmp.ne.s32.totalorder %s35, %s38
      %p47 = scmp.eq.s32.totalorder %s18, 1
      %p48 = por %p46, %p47
      %p49 = scmp.ne.s32.totalorder %s38, %s39
      %p50 = scmp.eq.s32.totalorder %s18, 0
      %p51 = por %p49, %p50
      %p52 = scmp.ne.s32.totalorder %s38, %s39
      %p53 = scmp.eq.s32.totalorder %s19, 1
      %p54 = por %p52, %p53
      %p56 = scmp.ne.s32.totalorder %s39, %s55
      %p57 = scmp.eq.s32.totalorder %s19, 0
      %p58 = por %p56, %p57
      %s59 = ssub.s32 %s21, %s28
      %p60 = scmp.eq.s32.totalorder %s59, 0
      %s62 = sadd.s32 %s61, 1
      %s63 = scalar_select %p60, %s61, %s62
      %p66 = pneg %p60
      %p67 = scmp.eq.s32.totalorder %s13, 1
      %p68 = por %p66, %p67
      %p69 = scmp.ne.s32.totalorder %s61, %s64
      %p70 = scmp.eq.s32.totalorder %s13, 0
      %p71 = por %p69, %p70
      %p72 = scmp.ne.s32.totalorder %s61, %s64
      %p73 = scmp.eq.s32.totalorder %s18, 1
      %p74 = por %p72, %p73
      %p75 = scmp.ne.s32.totalorder %s64, %s65
      %p76 = scmp.eq.s32.totalorder %s18, 0
      %p77 = por %p75, %p76
      %p78 = scmp.ne.s32.totalorder %s64, %s65
      %p79 = scmp.eq.s32.totalorder %s19, 1
      %p80 = por %p78, %p79
      %p82 = scmp.ne.s32.totalorder %s65, %s81
      %p83 = scmp.eq.s32.totalorder %s19, 0
      %p84 = por %p82, %p83
      %s85 = ssub.s32 %s21, %s28
      %p86 = scmp.eq.s32.totalorder %s85, 0
      %s88 = sadd.s32 %s87, 1
      %s89 = scalar_select %p86, %s87, %s88
      %p92 = pneg %p86
      %p93 = scmp.eq.s32.totalorder %s13, 1
      %p94 = por %p92, %p93
      %p95 = scmp.ne.s32.totalorder %s87, %s90
      %p96 = scmp.eq.s32.totalorder %s13, 0
      %p97 = por %p95, %p96
      %p98 = scmp.ne.s32.totalorder %s87, %s90
      %p99 = scmp.eq.s32.totalorder %s18, 1
      %p100 = por %p98, %p99
      %p101 = scmp.ne.s32.totalorder %s90, %s91
      %p102 = scmp.eq.s32.totalorder %s18, 0
      %p103 = por %p101, %p102
      %p104 = scmp.ne.s32.totalorder %s90, %s91
      %p105 = scmp.eq.s32.totalorder %s19, 1
      %p106 = por %p104, %p105
      %p108 = scmp.ne.s32.totalorder %s91, %s107
      %p109 = scmp.eq.s32.totalorder %s19, 0
      %p110 = por %p108, %p109
      %s111 = ssub.s32 %s21, %s28
      %p112 = scmp.eq.s32.totalorder %s111, 0
      %s114 = sadd.s32 %s113, 1
      %s115 = scalar_select %p112, %s113, %s114
      %p118 = pneg %p112
      %p119 = scmp.eq.s32.totalorder %s13, 1
      %p120 = por %p118, %p119
      %p121 = scmp.ne.s32.totalorder %s113, %s116
      %p122 = scmp.eq.s32.totalorder %s13, 0
      %p123 = por %p121, %p122
      %p124 = scmp.ne.s32.totalorder %s113, %s116
      %p125 = scmp.eq.s32.totalorder %s18, 1
      %p126 = por %p124, %p125
      %p127 = scmp.ne.s32.totalorder %s116, %s117
      %p128 = scmp.eq.s32.totalorder %s18, 0
      %p129 = por %p127, %p128
      %p130 = scmp.ne.s32.totalorder %s116, %s117
      %p131 = scmp.eq.s32.totalorder %s19, 1
      %p132 = por %p130, %p131
      %p134 = scmp.ne.s32.totalorder %s117, %s133
      %p135 = scmp.eq.s32.totalorder %s19, 0
      %p136 = por %p134, %p135
      %s137 = ssub.s32 %s20, %s32
      %s138 = ssub.s32 %s21, %s28
      %s139 = sor.u32 %s137, %s138
      %p140 = scmp.eq.s32.totalorder %s139, 0
      %s142 = sadd.s32 %s141, 1
      %s143 = scalar_select %p140, %s141, %s142
      %p146 = pneg %p140
      %p147 = scmp.eq.s32.totalorder %s13, 1
      %p148 = por %p146, %p147
      %p149 = scmp.ne.s32.totalorder %s141, %s144
      %p150 = scmp.eq.s32.totalorder %s13, 0
      %p151 = por %p149, %p150
      %p152 = scmp.ne.s32.totalorder %s141, %s144
      %p153 = scmp.eq.s32.totalorder %s18, 1
      %p154 = por %p152, %p153
      %p155 = scmp.ne.s32.totalorder %s144, %s145
      %p156 = scmp.eq.s32.totalorder %s18, 0
      %p157 = por %p155, %p156
      %p158 = scmp.ne.s32.totalorder %s144, %s145
      %p159 = scmp.eq.s32.totalorder %s19, 1
      %p160 = por %p158, %p159
      %p162 = scmp.ne.s32.totalorder %s145, %s161
      %p163 = scmp.eq.s32.totalorder %s19, 0
      %p164 = por %p162, %p163
      %p165 = scmp.le.s32.totalorder 1, %s13
      %p166 = scmp.lt.s32.totalorder %s13, 3
      %p167 = pnand %p165, %p166
      %p168 = pneg %p167
      // Predicated region
      $region9: #{conv_feature_extractor.5} parent=5 // pred_check
        _
      $region10: #{conv_feature_extractor.5} parent=5 // pred_check_branch
        %170 = sbr.rel (%p167) target = $region12
      $region11: #{conv_feature_extractor.5} parent=5 // pred_region
        %s171 = ssub.s32 %s13, 1
        // Predicated region
        $region13: #{conv_feature_extractor.5} parent=11 // pred_check
          %p172 = pneg %p77
        $region14: #{conv_feature_extractor.5} parent=11 // pred_check_branch
          %174 = sbr.rel (%p172) target = $region16
        $region15: #{conv_feature_extractor.5} parent=11 // pred_region
          %s175 = smul.u32 2, %s23
          %p176 = scmp.lt.s32.totalorder %s175, 1
          %s177 = scalar_select %p176, %s175, 1
          %s178 = smul.addr %s177, 4
          %s179 = scalar_lea.vmem %s1, %s178
          %s180 = smul.u32 2, %s23
        $region16: #{conv_feature_extractor.5} parent=11 // pred_fallthru
          _
        // Predicated region
        $region17: #{conv_feature_extractor.5} parent=11 // pred_check
          %p181 = pneg %p103
        $region18: #{conv_feature_extractor.5} parent=11 // pred_check_branch
          %183 = sbr.rel (%p181) target = $region20
        $region19: #{conv_feature_extractor.5} parent=11 // pred_region
          %s184 = smul.u32 2, %s23
          %p185 = scmp.lt.s32.totalorder %s184, 1
          %s186 = scalar_select %p185, %s184, 1
          %s187 = scalar_lea.vmem %s2, %s186
          %s188 = smul.u32 2, %s23
        $region20: #{conv_feature_extractor.5} parent=11 // pred_fallthru
          _
        // Predicated region
        $region21: #{conv_feature_extractor.5} parent=11 // pred_check
          %p189 = pneg %p129
        $region22: #{conv_feature_extractor.5} parent=11 // pred_check_branch
          %191 = sbr.rel (%p189) target = $region24
        $region23: #{conv_feature_extractor.5} parent=11 // pred_region
          %s192 = smul.u32 2, %s23
          %p193 = scmp.lt.s32.totalorder %s192, 1
          %s194 = scalar_select %p193, %s192, 1
          %s195 = scalar_lea.vmem %s3, %s194
          %s196 = smul.u32 2, %s23
        $region24: #{conv_feature_extractor.5} parent=11 // pred_fallthru
          _
      $region12: #{conv_feature_extractor.5} parent=5 // pred_fallthru
        _
      %p197 = scmp.lt.s32.totalorder %s13, 2
      // Predicated region
      $region25: #{conv_feature_extractor.5} parent=5 // pred_check
        %p198 = pneg %p197
      $region26: #{conv_feature_extractor.5} parent=5 // pred_check_branch
        %200 = sbr.rel (%p198) target = $region28
      $region27: #{conv_feature_extractor.5} parent=5 // pred_region
        // Predicated region
        $region29: #{conv_feature_extractor.5} parent=27 // pred_check
          %p201 = pneg %p45
        $region30: #{conv_feature_extractor.5} parent=27 // pred_check_branch
          %203 = sbr.rel (%p201) target = $region32
        $region31: #{conv_feature_extractor.5} parent=27 // pred_region
          %s204 = sand.u32 %s35, 1
          %s205 = sand.u32 %s35, 1
          %s206 = smul.addr %s205, 4
          %s207 = scalar_lea.vmem [#allocation2], %s206
          %s208 = smul.addr %s20, 2
          %s209 = scalar_lea.vmem %s0, %s208
          // Predicated region
          $region33: #{conv_feature_extractor.5} parent=31 // pred_check
            _
          $region34: #{conv_feature_extractor.5} parent=31 // pred_check_branch
            %211 = sbr.rel (0) target = $region36
          $region35: #{conv_feature_extractor.5} parent=31 // pred_region
            // Predicated region
            $region37: #{conv_feature_extractor.5} parent=35 // pred_check
              _
            $region38: #{conv_feature_extractor.5} parent=35 // pred_check_branch
              %213 = sbr.rel target = $region40
            $region39: #{conv_feature_extractor.5} parent=35 // pred_region
              // Predicated region
              $region52: #{conv_feature_extractor.5} parent=39 // pred_check
                _
              $region53: #{conv_feature_extractor.5} parent=39 // pred_check_branch
                %230 = sbr.rel (0) target = $region55
              $region54: #{conv_feature_extractor.5} parent=39 // pred_region
                loop: start=0, step=1, limit=1
                $region56: #{conv_feature_extractor.5} parent=54 // loop_pre_header
                  _
                $region57: #{conv_feature_extractor.5} parent=54 // loop_header
                  %s233 = sphi 0, %s237
                  %p234 = scmp.ge.s32.totalorder %s233, 1
                  %s238 = sphi %s209, %s209
                  %s239 = sphi %s207, %s207
                $region58: #{conv_feature_extractor.5} parent=54 // loop_header_branch
                  %236 = sbr.rel (%p234) target = $region62
                $region59: #{conv_feature_extractor.5} parent=54 // loop_body
                  %v240 = vld [vmem:[%s238] sm:$0x3]
                  %241 = vst [vmem:[%s239] sm:$0x3] %v240
                  %v242 = vld [vmem:[%s238 + $0x4] sm:$0x3]
                  %243 = vst [vmem:[%s239 + $0x2] sm:$0x3] %v242
                $region60: #{conv_feature_extractor.5} parent=54 // loop_footer
                  %s237 = sadd.s32 1, %s233
                $region61: #{conv_feature_extractor.5} parent=54 // loop_footer_branch
                  %232 = sbr.rel target = $region57
                $region62: #{conv_feature_extractor.5} parent=54 // loop_exit
                  _
              $region55: #{conv_feature_extractor.5} parent=39 // pred_fallthru
                _
            $region40: #{conv_feature_extractor.5} parent=35 // pred_fallthru
              _
            // Predicated region
            $region41: #{conv_feature_extractor.5} parent=35 // pred_check
              _
            $region42: #{conv_feature_extractor.5} parent=35 // pred_check_branch
              %215 = sbr.rel (0) target = $region44
            $region43: #{conv_feature_extractor.5} parent=35 // pred_region
              loop: start=0, step=1, limit=1
              $region45: #{conv_feature_extractor.5} parent=43 // loop_pre_header
                _
              $region46: #{conv_feature_extractor.5} parent=43 // loop_header
                %s218 = sphi 0, %s222
                %p219 = scmp.ge.s32.totalorder %s218, 1
                %s223 = sphi %s209, %s209
                %s224 = sphi %s207, %s207
              $region47: #{conv_feature_extractor.5} parent=43 // loop_header_branch
                %221 = sbr.rel (%p219) target = $region51
              $region48: #{conv_feature_extractor.5} parent=43 // loop_body
                %v225 = vld [vmem:[%s223] sm:$0x3]
                %226 = vst [vmem:[%s224] sm:$0x3] %v225
                %v227 = vld [vmem:[%s223 + $0x4] sm:$0x3]
                %228 = vst [vmem:[%s224 + $0x2] sm:$0x3] %v227
              $region49: #{conv_feature_extractor.5} parent=43 // loop_footer
                %s222 = sadd.s32 1, %s218
              $region50: #{conv_feature_extractor.5} parent=43 // loop_footer_branch
                %217 = sbr.rel target = $region46
              $region51: #{conv_feature_extractor.5} parent=43 // loop_exit
                _
            $region44: #{conv_feature_extractor.5} parent=35 // pred_fallthru
              _
          $region36: #{conv_feature_extractor.5} parent=31 // pred_fallthru
            _
          %244 = vnop
        $region32: #{conv_feature_extractor.5} parent=27 // pred_fallthru
          _
      $region28: #{conv_feature_extractor.5} parent=5 // pred_fallthru
        _
      %p245 = scmp.le.s32.totalorder 1, %s13
      %p246 = scmp.lt.s32.totalorder %s13, 3
      %p247 = pnand %p245, %p246
      %p248 = pneg %p247
      // Predicated region
      $region63: #{conv_feature_extractor.5} parent=5 // pred_check
        _
      $region64: #{conv_feature_extractor.5} parent=5 // pred_check_branch
        %250 = sbr.rel (%p247) target = $region66
      $region65: #{conv_feature_extractor.5} parent=5 // pred_region
        %s251 = ssub.s32 %s13, 1
        %s252 = sand.u32 %s38, 1
        %s253 = sand.u32 %s38, 1
        %s254 = smul.addr %s253, 4
        %s255 = scalar_lea.vmem [#allocation2], %s254
        // Predicated region
        $region67: #{conv_feature_extractor.5} parent=65 // pred_check
          %p256 = pneg %p51
        $region68: #{conv_feature_extractor.5} parent=65 // pred_check_branch
          %258 = sbr.rel (%p256) target = $region70
        $region69: #{conv_feature_extractor.5} parent=65 // pred_region
          _
        $region70: #{conv_feature_extractor.5} parent=65 // pred_fallthru
          _
        %s259 = sand.u32 %s38, 1
        %s260 = sand.u32 %s38, 1
        %s261 = smul.addr %s260, 4
        %s262 = scalar_lea.vmem [#allocation2], %s261
        %p263 = pneg %p51
        %p264 = pneg %p48
        %s265 = smul.u32 2, %s23
        %p266 = scmp.lt.s32.totalorder %s265, 1
        %s267 = scalar_select %p266, %s265, 1
        %s268 = smul.addr %s267, 4
        %s269 = scalar_lea.vmem %s1, %s268
        %p270 = pneg %p77
        %p271 = pneg %p74
        %s272 = smul.u32 2, %s23
        %p273 = scmp.lt.s32.totalorder %s272, 1
        %s274 = scalar_select %p273, %s272, 1
        %s275 = scalar_lea.vmem %s2, %s274
        %p276 = pneg %p103
        %p277 = pneg %p100
        %s278 = smul.u32 2, %s23
        %p279 = scmp.lt.s32.totalorder %s278, 1
        %s280 = scalar_select %p279, %s278, 1
        %s281 = scalar_lea.vmem %s3, %s280
        %p282 = pneg %p129
        %p283 = pneg %p126
        %p284 = pneg %p157
        %p285 = pneg %p154
        %s286 = sand.u32 %s144, 1
        %s287 = scalar_lea.sflag [#allocation4], %s286
        %s288 = sand.u32 %s144, 1
        %s289 = smul.addr %s288, 4
        %s290 = scalar_lea.vmem [#allocation3], %s289
        %s291 = smul.u32 2, %s23
        %p292 = scmp.lt.s32.totalorder %s291, 1
        %s293 = scalar_select %p292, %s291, 1
        %s294 = smul.addr %s293, 4
        %s295 = scalar_lea.vmem %s1, %s294
        %s296 = smul.u32 2, %s23
        %s297 = smul.u32 2, %s23
        %p298 = scmp.lt.s32.totalorder %s297, 1
        %s299 = scalar_select %p298, %s297, 1
        %s300 = scalar_lea.vmem %s2, %s299
        %s301 = smul.u32 2, %s23
        %s302 = smul.u32 2, %s23
        %p303 = scmp.lt.s32.totalorder %s302, 1
        %s304 = scalar_select %p303, %s302, 1
        %s305 = scalar_lea.vmem %s3, %s304
        %s306 = smul.u32 2, %s23
        %s307 = smul.u32 2, %s23
        %v309 = vld [vmem:[%s255] sm:$0x1]
        %v310 = vld [vmem:[%s295] sm:$0xff]
        %v311 = vld [vmem:[%s295 + $0x8] sm:$0xff]
        %v312 = vld [vmem:[%s295 + $0x10] sm:$0xff]
        %v313 = vld [vmem:[%s295 + $0x18] sm:$0xff]
        %v314 = vld [vmem:[%s295 + $0x20] sm:$0xff]
        %v315 = vld [vmem:[%s295 + $0x28] sm:$0xff]
        %v316 = vld [vmem:[%s295 + $0x30] sm:$0xff]
        %v317 = vld [vmem:[%s295 + $0x38] sm:$0xff]
        %v318 = vld [vmem:[%s295 + $0x40] sm:$0xff]
        %v319 = vld [vmem:[%s295 + $0x48] sm:$0xff]
        %v320 = vld [vmem:[%s295 + $0x50] sm:$0xff]
        %v321 = vld [vmem:[%s295 + $0x58] sm:$0xff]
        %v322 = vld [vmem:[%s295 + $0x60] sm:$0xff]
        %v323 = vld [vmem:[%s295 + $0x68] sm:$0xff]
        %v324 = vld [vmem:[%s295 + $0x70] sm:$0xff]
        %v325 = vld [vmem:[%s295 + $0x78] sm:$0xff]
        %s326 = scalar_lea.vmem %s255, 2 [#allocation2]
        %v327 = vld [vmem:[%s326] sm:$0x1]
        %s328 = scalar_lea.vmem %s295, 128
        %v329 = vld [vmem:[%s328] sm:$0xff]
        %v330 = vld [vmem:[%s328 + $0x8] sm:$0xff]
        %v331 = vld [vmem:[%s328 + $0x10] sm:$0xff]
        %v332 = vld [vmem:[%s328 + $0x18] sm:$0xff]
        %v333 = vld [vmem:[%s328 + $0x20] sm:$0xff]
        %v334 = vld [vmem:[%s328 + $0x28] sm:$0xff]
        %v335 = vld [vmem:[%s328 + $0x30] sm:$0xff]
        %v336 = vld [vmem:[%s328 + $0x38] sm:$0xff]
        %v337 = vld [vmem:[%s328 + $0x40] sm:$0xff]
        %v338 = vld [vmem:[%s328 + $0x48] sm:$0xff]
        %v339 = vld [vmem:[%s328 + $0x50] sm:$0xff]
        %v340 = vld [vmem:[%s328 + $0x58] sm:$0xff]
        %v341 = vld [vmem:[%s328 + $0x60] sm:$0xff]
        %v342 = vld [vmem:[%s328 + $0x68] sm:$0xff]
        %v343 = vld [vmem:[%s328 + $0x70] sm:$0xff]
        %v344 = vld [vmem:[%s328 + $0x78] sm:$0xff]
        %v361 = vunpack.c.l.b16 %v329
        %v362 = vunpack.c.h.b16 %v329
        %v363 = vunpack.c.l.b16 %v330
        %v364 = vunpack.c.h.b16 %v330
        %v365 = vunpack.c.l.b16 %v331
        %v366 = vunpack.c.h.b16 %v331
        %v367 = vunpack.c.l.b16 %v332
        %v368 = vunpack.c.h.b16 %v332
        %v369 = vunpack.c.l.b16 %v333
        %v370 = vunpack.c.h.b16 %v333
        %v371 = vunpack.c.l.b16 %v334
        %v372 = vunpack.c.h.b16 %v334
        %v373 = vunpack.c.l.b16 %v335
        %v374 = vunpack.c.h.b16 %v335
        %v375 = vunpack.c.l.b16 %v336
        %v376 = vunpack.c.h.b16 %v336
        %v377 = vunpack.c.l.b16 %v337
        %v378 = vunpack.c.h.b16 %v337
        %v379 = vunpack.c.l.b16 %v338
        %v380 = vunpack.c.h.b16 %v338
        %v381 = vunpack.c.l.b16 %v339
        %v382 = vunpack.c.h.b16 %v339
        %v383 = vunpack.c.l.b16 %v340
        %v384 = vunpack.c.h.b16 %v340
        %v385 = vunpack.c.l.b16 %v341
        %v386 = vunpack.c.h.b16 %v341
        %v387 = vunpack.c.l.b16 %v342
        %v388 = vunpack.c.h.b16 %v342
        %v389 = vunpack.c.l.b16 %v343
        %v390 = vunpack.c.h.b16 %v343
        %v391 = vunpack.c.l.b16 %v344
        %v392 = vunpack.c.h.b16 %v344
        %v393 = vpack.c.b16 %v363, %v361
        %v394 = vpack.c.b16 %v364, %v362
        %v395 = vpack.c.b16 %v367, %v365
        %v396 = vpack.c.b16 %v368, %v366
        %v397 = vpack.c.b16 %v371, %v369
        %v398 = vpack.c.b16 %v372, %v370
        %v399 = vpack.c.b16 %v375, %v373
        %v400 = vpack.c.b16 %v376, %v374
        %v401 = vpack.c.b16 %v379, %v377
        %v402 = vpack.c.b16 %v380, %v378
        %v403 = vpack.c.b16 %v383, %v381
        %v404 = vpack.c.b16 %v384, %v382
        %v405 = vpack.c.b16 %v387, %v385
        %v406 = vpack.c.b16 %v388, %v386
        %v407 = vpack.c.b16 %v391, %v389
        %v408 = vpack.c.b16 %v392, %v390
        %425 = vmatprep.subr.bf16.mxu0 %v394
        %426 = vmatpush1.bf16.msra.mxu0 %v393
        %427 = vmatprep.subr.bf16.mxu0 %v396
        %428 = vmatpush1.bf16.msra.mxu0 %v395
        %429 = vmatprep.subr.bf16.mxu0 %v398
        %430 = vmatpush1.bf16.msra.mxu0 %v397
        %431 = vmatprep.subr.bf16.mxu0 %v400
        %432 = vmatpush1.bf16.msra.mxu0 %v399
        %433 = vmatprep.subr.bf16.mxu0 %v402
        %434 = vmatpush1.bf16.msra.mxu0 %v401
        %435 = vmatprep.subr.bf16.mxu0 %v404
        %436 = vmatpush1.bf16.msra.mxu0 %v403
        %437 = vmatprep.subr.bf16.mxu0 %v406
        %438 = vmatpush1.bf16.msra.mxu0 %v405
        %439 = vmatprep.subr.bf16.mxu0 %v408
        %440 = vmatpush1.bf16.msra.mxu0 %v407
        %441 = vmatprep.subr.bf16.mxu0 0
        %442 = vmatpush1.bf16.msra.mxu0 0
        %443 = vmatprep.subr.bf16.mxu0 0
        %444 = vmatpush1.bf16.msra.mxu0 0
        %445 = vmatprep.subr.bf16.mxu0 0
        %446 = vmatpush1.bf16.msra.mxu0 0
        %447 = vmatprep.subr.bf16.mxu0 0
        %448 = vmatpush1.bf16.msra.mxu0 0
        %449 = vmatprep.subr.bf16.mxu0 0
        %450 = vmatpush1.bf16.msra.mxu0 0
        %451 = vmatprep.subr.bf16.mxu0 0
        %452 = vmatpush1.bf16.msra.mxu0 0
        %453 = vmatprep.subr.bf16.mxu0 0
        %454 = vmatpush1.bf16.msra.mxu0 0
        %455 = vmatprep.subr.bf16.mxu0 0
        %456 = vmatpush1.bf16.msra.mxu0 0
        %457 = vmatprep.mubr.bf16.mxu0 0
        %458 = vmatmul.mubr.bf16.gmra.mrb[0].mxu0 %v327
        %v459 = vpop.f32.mrb[0].mxu0
        %v460 = vadd.f32 0.0, %v459
        %v461 = vpop.f32.mrb[0].mxu0
        %v462 = vadd.f32 0.0, %v461
        %v463 = vpop.f32.mrb[0].mxu0
        %v464 = vpop.f32.mrb[0].mxu0
        %465 = vdwg.mxu0
        %v482 = vunpack.c.l.b16 %v310
        %v483 = vunpack.c.h.b16 %v310
        %v484 = vunpack.c.l.b16 %v311
        %v485 = vunpack.c.h.b16 %v311
        %v486 = vunpack.c.l.b16 %v312
        %v487 = vunpack.c.h.b16 %v312
        %v488 = vunpack.c.l.b16 %v313
        %v489 = vunpack.c.h.b16 %v313
        %v490 = vunpack.c.l.b16 %v314
        %v491 = vunpack.c.h.b16 %v314
        %v492 = vunpack.c.l.b16 %v315
        %v493 = vunpack.c.h.b16 %v315
        %v494 = vunpack.c.l.b16 %v316
        %v495 = vunpack.c.h.b16 %v316
        %v496 = vunpack.c.l.b16 %v317
        %v497 = vunpack.c.h.b16 %v317
        %v498 = vunpack.c.l.b16 %v318
        %v499 = vunpack.c.h.b16 %v318
        %v500 = vunpack.c.l.b16 %v319
        %v501 = vunpack.c.h.b16 %v319
        %v502 = vunpack.c.l.b16 %v320
        %v503 = vunpack.c.h.b16 %v320
        %v504 = vunpack.c.l.b16 %v321
        %v505 = vunpack.c.h.b16 %v321
        %v506 = vunpack.c.l.b16 %v322
        %v507 = vunpack.c.h.b16 %v322
        %v508 = vunpack.c.l.b16 %v323
        %v509 = vunpack.c.h.b16 %v323
        %v510 = vunpack.c.l.b16 %v324
        %v511 = vunpack.c.h.b16 %v324
        %v512 = vunpack.c.l.b16 %v325
        %v513 = vunpack.c.h.b16 %v325
        %v514 = vpack.c.b16 %v484, %v482
        %v515 = vpack.c.b16 %v485, %v483
        %v516 = vpack.c.b16 %v488, %v486
        %v517 = vpack.c.b16 %v489, %v487
        %v518 = vpack.c.b16 %v492, %v490
        %v519 = vpack.c.b16 %v493, %v491
        %v520 = vpack.c.b16 %v496, %v494
        %v521 = vpack.c.b16 %v497, %v495
        %v522 = vpack.c.b16 %v500, %v498
        %v523 = vpack.c.b16 %v501, %v499
        %v524 = vpack.c.b16 %v504, %v502
        %v525 = vpack.c.b16 %v505, %v503
        %v526 = vpack.c.b16 %v508, %v506
        %v527 = vpack.c.b16 %v509, %v507
        %v528 = vpack.c.b16 %v512, %v510
        %v529 = vpack.c.b16 %v513, %v511
        %546 = vmatprep.subr.bf16.mxu0 %v515
        %547 = vmatpush1.bf16.msra.mxu0 %v514
        %548 = vmatprep.subr.bf16.mxu0 %v517
        %549 = vmatpush1.bf16.msra.mxu0 %v516
        %550 = vmatprep.subr.bf16.mxu0 %v519
        %551 = vmatpush1.bf16.msra.mxu0 %v518
        %552 = vmatprep.subr.bf16.mxu0 %v521
        %553 = vmatpush1.bf16.msra.mxu0 %v520
        %554 = vmatprep.subr.bf16.mxu0 %v523
        %555 = vmatpush1.bf16.msra.mxu0 %v522
        %556 = vmatprep.subr.bf16.mxu0 %v525
        %557 = vmatpush1.bf16.msra.mxu0 %v524
        %558 = vmatprep.subr.bf16.mxu0 %v527
        %559 = vmatpush1.bf16.msra.mxu0 %v526
        %560 = vmatprep.subr.bf16.mxu0 %v529
        %561 = vmatpush1.bf16.msra.mxu0 %v528
        %562 = vmatprep.subr.bf16.mxu0 0
        %563 = vmatpush1.bf16.msra.mxu0 0
        %564 = vmatprep.subr.bf16.mxu0 0
        %565 = vmatpush1.bf16.msra.mxu0 0
        %566 = vmatprep.subr.bf16.mxu0 0
        %567 = vmatpush1.bf16.msra.mxu0 0
        %568 = vmatprep.subr.bf16.mxu0 0
        %569 = vmatpush1.bf16.msra.mxu0 0
        %570 = vmatprep.subr.bf16.mxu0 0
        %571 = vmatpush1.bf16.msra.mxu0 0
        %572 = vmatprep.subr.bf16.mxu0 0
        %573 = vmatpush1.bf16.msra.mxu0 0
        %574 = vmatprep.subr.bf16.mxu0 0
        %575 = vmatpush1.bf16.msra.mxu0 0
        %576 = vmatprep.subr.bf16.mxu0 0
        %577 = vmatpush1.bf16.msra.mxu0 0
        %578 = vmatprep.mubr.bf16.mxu0 0
        %579 = vmatmul.mubr.bf16.gmra.mrb[0].mxu0 %v309
        %v580 = vpop.f32.mrb[0].mxu0
        %v581 = vadd.f32 %v460, %v580
        %v582 = vpop.f32.mrb[0].mxu0
        %v583 = vadd.f32 %v462, %v582
        %v584 = vpop.f32.mrb[0].mxu0
        %v585 = vpop.f32.mrb[0].mxu0
        %586 = vdwg.mxu0
        %v587 = vld [vmem:[%s255] sm:$0x3]
        %s588 = scalar_lea.vmem %s295, 256
        %v589 = vld [vmem:[%s588] sm:$0xff]
        %v590 = vld [vmem:[%s588 + $0x8] sm:$0xff]
        %v591 = vld [vmem:[%s588 + $0x10] sm:$0xff]
        %v592 = vld [vmem:[%s588 + $0x18] sm:$0xff]
        %v593 = vld [vmem:[%s588 + $0x20] sm:$0xff]
        %v594 = vld [vmem:[%s588 + $0x28] sm:$0xff]
        %v595 = vld [vmem:[%s588 + $0x30] sm:$0xff]
        %v596 = vld [vmem:[%s588 + $0x38] sm:$0xff]
        %v597 = vld [vmem:[%s588 + $0x40] sm:$0xff]
        %v598 = vld [vmem:[%s588 + $0x48] sm:$0xff]
        %v599 = vld [vmem:[%s588 + $0x50] sm:$0xff]
        %v600 = vld [vmem:[%s588 + $0x58] sm:$0xff]
        %v601 = vld [vmem:[%s588 + $0x60] sm:$0xff]
        %v602 = vld [vmem:[%s588 + $0x68] sm:$0xff]
        %v603 = vld [vmem:[%s588 + $0x70] sm:$0xff]
        %v604 = vld [vmem:[%s588 + $0x78] sm:$0xff]
        %v607 = vunpack.c.l.s4 1983009808
        %v608 = vunpack.c.0.s8 %v607
        %v609 = vlaneseq
        %v610 = vshrl.u32 %v609, 7
        %v611 = vsub.s32 %v608, %v610
        %v612 = vrot.slane %v587, %v611
        %v614 = vshrl.u32 %v612, 16
        %v616 = vshll.u32 %v612, 16
        %v618 = vrot.slane %v616, 1
        %v619 = vor.u32 %v614, %v618
        %v637 = vunpack.c.l.b16 %v589
        %v638 = vunpack.c.h.b16 %v589
        %v639 = vunpack.c.l.b16 %v590
        %v640 = vunpack.c.h.b16 %v590
        %v641 = vunpack.c.l.b16 %v591
        %v642 = vunpack.c.h.b16 %v591
        %v643 = vunpack.c.l.b16 %v592
        %v644 = vunpack.c.h.b16 %v592
        %v645 = vunpack.c.l.b16 %v593
        %v646 = vunpack.c.h.b16 %v593
        %v647 = vunpack.c.l.b16 %v594
        %v648 = vunpack.c.h.b16 %v594
        %v649 = vunpack.c.l.b16 %v595
        %v650 = vunpack.c.h.b16 %v595
        %v651 = vunpack.c.l.b16 %v596
        %v652 = vunpack.c.h.b16 %v596
        %v653 = vunpack.c.l.b16 %v597
        %v654 = vunpack.c.h.b16 %v597
        %v655 = vunpack.c.l.b16 %v598
        %v656 = vunpack.c.h.b16 %v598
        %v657 = vunpack.c.l.b16 %v599
        %v658 = vunpack.c.h.b16 %v599
        %v659 = vunpack.c.l.b16 %v600
        %v660 = vunpack.c.h.b16 %v600
        %v661 = vunpack.c.l.b16 %v601
        %v662 = vunpack.c.h.b16 %v601
        %v663 = vunpack.c.l.b16 %v602
        %v664 = vunpack.c.h.b16 %v602
        %v665 = vunpack.c.l.b16 %v603
        %v666 = vunpack.c.h.b16 %v603
        %v667 = vunpack.c.l.b16 %v604
        %v668 = vunpack.c.h.b16 %v604
        %v669 = vpack.c.b16 %v639, %v637
        %v670 = vpack.c.b16 %v640, %v638
        %v671 = vpack.c.b16 %v643, %v641
        %v672 = vpack.c.b16 %v644, %v642
        %v673 = vpack.c.b16 %v647, %v645
        %v674 = vpack.c.b16 %v648, %v646
        %v675 = vpack.c.b16 %v651, %v649
        %v676 = vpack.c.b16 %v652, %v650
        %v677 = vpack.c.b16 %v655, %v653
        %v678 = vpack.c.b16 %v656, %v654
        %v679 = vpack.c.b16 %v659, %v657
        %v680 = vpack.c.b16 %v660, %v658
        %v681 = vpack.c.b16 %v663, %v661
        %v682 = vpack.c.b16 %v664, %v662
        %v683 = vpack.c.b16 %v667, %v665
        %v684 = vpack.c.b16 %v668, %v666
        %701 = vmatprep.subr.bf16.mxu0 %v670
        %702 = vmatpush1.bf16.msra.mxu0 %v669
        %703 = vmatprep.subr.bf16.mxu0 %v672
        %704 = vmatpush1.bf16.msra.mxu0 %v671
        %705 = vmatprep.subr.bf16.mxu0 %v674
        %706 = vmatpush1.bf16.msra.mxu0 %v673
        %707 = vmatprep.subr.bf16.mxu0 %v676
        %708 = vmatpush1.bf16.msra.mxu0 %v675
        %709 = vmatprep.subr.bf16.mxu0 %v678
        %710 = vmatpush1.bf16.msra.mxu0 %v677
        %711 = vmatprep.subr.bf16.mxu0 %v680
        %712 = vmatpush1.bf16.msra.mxu0 %v679
        %713 = vmatprep.subr.bf16.mxu0 %v682
        %714 = vmatpush1.bf16.msra.mxu0 %v681
        %715 = vmatprep.subr.bf16.mxu0 %v684
        %716 = vmatpush1.bf16.msra.mxu0 %v683
        %717 = vmatprep.subr.bf16.mxu0 0
        %718 = vmatpush1.bf16.msra.mxu0 0
        %719 = vmatprep.subr.bf16.mxu0 0
        %720 = vmatpush1.bf16.msra.mxu0 0
        %721 = vmatprep.subr.bf16.mxu0 0
        %722 = vmatpush1.bf16.msra.mxu0 0
        %723 = vmatprep.subr.bf16.mxu0 0
        %724 = vmatpush1.bf16.msra.mxu0 0
        %725 = vmatprep.subr.bf16.mxu0 0
        %726 = vmatpush1.bf16.msra.mxu0 0
        %727 = vmatprep.subr.bf16.mxu0 0
        %728 = vmatpush1.bf16.msra.mxu0 0
        %729 = vmatprep.subr.bf16.mxu0 0
        %730 = vmatpush1.bf16.msra.mxu0 0
        %731 = vmatprep.subr.bf16.mxu0 0
        %732 = vmatpush1.bf16.msra.mxu0 0
        %733 = vmatprep.mubr.bf16.mxu0 0
        %734 = vmatmul.mubr.bf16.gmra.mrb[0].mxu0 %v619
        %v735 = vpop.f32.mrb[0].mxu0
        %v736 = vadd.f32 0.0, %v735
        %v737 = vpop.f32.mrb[0].mxu0
        %v738 = vadd.f32 0.0, %v737
        %v739 = vpop.f32.mrb[0].mxu0
        %v740 = vpop.f32.mrb[0].mxu0
        %741 = vdwg.mxu0
        %v742 = vadd.f32 %v581, %v736
        %v743 = vadd.f32 %v583, %v738
        %v744 = vld [vmem:[%s300] sm:$0x3]
        %v746 = vlaneseq
        %v747 = vshrl.u32 %v746, 7
        %v748 = vsub.s32 0, %v747
        %v749 = vrot.slane %v744, %v748
        %v750 = vlaneseq
        %v751 = vshrl.u32 %v750, 7
        %v752 = vsub.s32 1, %v751
        %v753 = vrot.slane %v744, %v752
        %v756 = vmul.f32 %v742, %v749
        %v757 = vmul.f32 %v743, %v753
        %v758 = vld [vmem:[%s305] sm:$0x3]
        %v760 = vlaneseq
        %v761 = vshrl.u32 %v760, 7
        %v762 = vsub.s32 0, %v761
        %v763 = vrot.slane %v758, %v762
        %v764 = vlaneseq
        %v765 = vshrl.u32 %v764, 7
        %v766 = vsub.s32 1, %v765
        %v767 = vrot.slane %v758, %v766
        %v770 = vadd.f32 %v756, %v763
        %v771 = vadd.f32 %v757, %v767
        %v772 = vmax.f32 %v770, 0.0
        %v773 = vmax.f32 %v771, 0.0
        %v776 = vcombine.low %v772, %v773
        %v778 = vunpack.c.l.s4 1983009808
        %v779 = vunpack.c.0.s8 %v778
        %v780 = vlaneseq
        %v781 = vshrl.u32 %v780, 7
        %v782 = vsub.s32 %v779, %v781
        %v783 = vrot.slane %v776, %v782
        %785 = vst [vmem:[%s290] sm:$0xf] %v783
        %s786 = sand.u32 %s144, 1
        %s787 = scalar_lea.sflag [#allocation4], %s786
        %s788 = sand.u32 %s144, 1
        %s789 = smul.addr %s788, 4
        %s790 = scalar_lea.vmem [#allocation3], %s789
        // Predicated region
        $region71: #{conv_feature_extractor.5} parent=65 // pred_check
          %p791 = pneg %p154
        $region72: #{conv_feature_extractor.5} parent=65 // pred_check_branch
          %793 = sbr.rel (%p791) target = $region74
        $region73: #{conv_feature_extractor.5} parent=65 // pred_region
          %s794 = smul.u32 2, %s23
          %s796 = ssub.s32 64, 64
          %797 = vsyncadd %s787, %s796
          %s798 = smul.addr %s22, 2
          %s799 = sadd.s32 %s794, %s798
          %s800 = smul.addr %s799, 32
          %s801 = scalar_lea.hbm %s4, %s800
          %s803 = sshll.u32 %s790, 4
          %s804 = int_to_ptr.vmem [resolvable:$true] %s803
          %806 = dma.vmem_to_hbm [thread:$0]  %s804, 64, %s801, %s787
        $region74: #{conv_feature_extractor.5} parent=65 // pred_fallthru
          _
      $region66: #{conv_feature_extractor.5} parent=5 // pred_fallthru
        _
      %p807 = scmp.le.s32.totalorder 2, %s13
      // Predicated region
      $region75: #{conv_feature_extractor.5} parent=5 // pred_check
        %p808 = pneg %p807
      $region76: #{conv_feature_extractor.5} parent=5 // pred_check_branch
        %810 = sbr.rel (%p808) target = $region78
      $region77: #{conv_feature_extractor.5} parent=5 // pred_region
        %s811 = ssub.s32 %s13, 2
        // Predicated region
        $region79: #{conv_feature_extractor.5} parent=77 // pred_check
          %p812 = pneg %p160
        $region80: #{conv_feature_extractor.5} parent=77 // pred_check_branch
          %814 = sbr.rel (%p812) target = $region82
        $region81: #{conv_feature_extractor.5} parent=77 // pred_region
          %s815 = sand.u32 %s145, 1
          %s816 = scalar_lea.sflag [#allocation4], %s815
          %s817 = sand.u32 %s145, 1
          %s818 = smul.addr %s817, 4
          %s819 = scalar_lea.vmem [#allocation3], %s818
          %820 = dma.done %s816, 64
        $region82: #{conv_feature_extractor.5} parent=77 // pred_fallthru
          _
      $region78: #{conv_feature_extractor.5} parent=5 // pred_fallthru
        _
    $region6: #{conv_feature_extractor.5} parent=1 // loop_footer
      %s17 = sadd.s32 1, %s13
    $region7: #{conv_feature_extractor.5} parent=1 // loop_footer_branch
      %12 = sbr.rel target = $region3
    $region8: #{conv_feature_extractor.5} parent=1 // loop_exit
      _
    %821 = vsyncpa [#allocation4], 1
    %s822 = scalar_lea.sflag [#allocation4], 1
    %823 = vsyncpa %s822, 1

</llo_original>
